<compile_context>
chip_gen: v7x
topology: tpu7x:2x2x1
jax: 0.10.0
libtpu: 0.0.40
codegen_flags: <defaults>
</compile_context>

<pallas_src>
import functools

import jax
import jax.numpy as jnp
from jax import lax
from jax.experimental import pallas as pl
from jax.experimental.pallas import tpu as pltpu

HIDDEN = 32
OUT_DIM = 2
# bf16 MXU operands pack 16 rows per sublane tile -> pad batch to 16.
BATCH_PAD = 16


def fused_gru_kernel(x_ref, wx_ref, bx_ref, whh_rz_ref, whh_n_ref, bhhn_ref,
                     whead_ref, bhead_ref, out_ref, glue_ref, *, T, B):
    H4 = whh_rz_ref.shape[1]          # 4H = 128, columns [r_g|r_c|z_g|z_c]
    H2 = whh_n_ref.shape[1]           # 2H = 64,  columns [n_g|n_c]; fused hidden

    # ---- Prologue: expand the input glue in-kernel, once, into VMEM scratch.
    # x is (T*B, 2) time-major [gen|con]; wx scatters each branch's W_ih into
    # its gate column slots; bx carries b_ih (+ folded b_hh for the r/z blocks).
    glue_ref[...] = (
        jnp.dot(x_ref[...], wx_ref[...], preferred_element_type=jnp.float32)
        + bx_ref[...])                                          # (T*B, 6H)

    # Loop-invariant weight loads hoisted out of the serial recurrence.
    whh_rz = whh_rz_ref[...]          # (2H, 4H) bf16
    whh_n = whh_n_ref[...]            # (2H, 2H) bf16
    bhhn = bhhn_ref[...]              # (1, 2H)  f32  (n-gate recurrent bias)

    def step(t, h):
        base = pl.multiple_of(t * B, B)
        g = glue_ref[pl.ds(base, B), :]                          # (B, 6H)
        hb = h.astype(jnp.bfloat16)
        # Split dot: the [r|z] 128-lane column tile pops first so the sigmoid
        # overlaps the n-column drain (also matches v5e's 128-wide MXU tile).
        gh_rz = jnp.dot(hb, whh_rz, preferred_element_type=jnp.float32)  # (B,4H)
        gh_n = jnp.dot(hb, whh_n, preferred_element_type=jnp.float32)    # (B,2H)
        # One 128-lane sigmoid covers r and z for both branches.
        s = jax.nn.sigmoid(g[:, :H4] + gh_rz)                    # [r_g|r_c|z_g|z_c]
        r = s[:, :H2]
        # TODO(synk): the lane-64 slice for z lowers to an XLU rotate; it
        # should hide under the n-gate tanh — re-layout only if the bundle
        # dump shows it on the critical path.
        z = s[:, H2:]
        # n-gate: b_hh_n must stay inside r * (...) to match PyTorch GRU.
        n = jnp.tanh(g[:, H4:] + r * (gh_n + bhhn))              # (B, 2H)
        # h_new = (1 - z) * n + z * h  ==  n + z * (h - n)
        return n + z * (h - n)

    h0 = jnp.zeros((B, H2), jnp.float32)
    # T is static and small -> fully unroll the serial recurrence.
    h = lax.fori_loop(0, T, step, h0, unroll=True)

    # Collapsed head: blockdiag(fc_gen, fc_con) folded into fc_out on the host.
    out = jnp.tanh(jnp.dot(h, whead_ref[...],
                           preferred_element_type=jnp.float32) + bhead_ref[...])
    out_ref[...] = out.astype(out_ref.dtype)


def init_params(key):
    """PyTorch-shaped parameters (same layout as the nn.Module)."""
    H = HIDDEN
    k_gru = 1.0 / jnp.sqrt(H)
    k_fc = 1.0 / jnp.sqrt(H)
    k_out = 1.0 / jnp.sqrt(2 * H)
    keys = jax.random.split(key, 16)
    u = lambda k, shape, s: jax.random.uniform(k, shape, jnp.float32, -s, s)
    p = {}
    for i, name in enumerate(['gen', 'con']):
        base = i * 4
        p[f'gru_{name}'] = dict(
            w_ih=u(keys[base + 0], (3 * H, 1), k_gru),
            w_hh=u(keys[base + 1], (3 * H, H), k_gru),
            b_ih=u(keys[base + 2], (3 * H,), k_gru),
            b_hh=u(keys[base + 3], (3 * H,), k_gru),
        )
    for i, name in enumerate(['gen', 'con']):
        base = 8 + i * 2
        p[f'fc_{name}'] = dict(
            w=u(keys[base + 0], (H, H), k_fc),
            b=u(keys[base + 1], (H,), k_fc),
        )
    p['fc_out'] = dict(
        w=u(keys[12], (OUT_DIM, 2 * H), k_out),
        b=u(keys[13], (OUT_DIM,), k_out),
    )
    return p


def prepare_params(params):
    """One-time, parameter-only preprocessing (hoisted out of the per-call path).

    Produces kernel-ready arrays:
      wx      (2, 6H)  f32   per-branch W_ih scattered into gate column slots
      bx      (1, 6H)  f32   b_ih (+ folded b_hh for the r/z blocks)
      whh_rz  (2H, 4H) bf16  block-diag recurrent weights, cols [r_g|r_c|z_g|z_c]
      whh_n   (2H, 2H) bf16  block-diag recurrent weights, cols [n_g|n_c]
      bhhn    (1, 2H)  f32   n-gate recurrent bias (stays inside r*(...))
      w_head  (2H, 2)  f32   collapsed fc_gen/fc_con/fc_out head
      b_head  (1, 2)   f32
    """
    H = HIDDEN
    pg, pc = params['gru_gen'], params['gru_con']

    # ---- input-path scatter (input_dim == 1, so W_ih is a (3H,) vector) ----
    wg = pg['w_ih'][:, 0]                       # (3H,) gate order [r|z|n]
    wc = pc['w_ih'][:, 0]
    zH = jnp.zeros((H,), jnp.float32)
    wx_gen = jnp.concatenate([wg[:H], zH, wg[H:2 * H], zH, wg[2 * H:], zH])
    wx_con = jnp.concatenate([zH, wc[:H], zH, wc[H:2 * H], zH, wc[2 * H:]])
    wx = jnp.stack([wx_gen, wx_con]).astype(jnp.float32)          # (2, 6H)
    bx = jnp.concatenate([
        pg['b_ih'][:H] + pg['b_hh'][:H],
        pc['b_ih'][:H] + pc['b_hh'][:H],
        pg['b_ih'][H:2 * H] + pg['b_hh'][H:2 * H],
        pc['b_ih'][H:2 * H] + pc['b_hh'][H:2 * H],
        pg['b_ih'][2 * H:],
        pc['b_ih'][2 * H:],
    ])[None, :].astype(jnp.float32)                                # (1, 6H)

    # ---- fused block-diagonal recurrent weights ----
    wgh = pg['w_hh'].T                          # (H, 3H) columns [r|z|n]
    wch = pc['w_hh'].T
    zHH = jnp.zeros((H, H), jnp.float32)

    def blk(g):
        s = slice(g * H, (g + 1) * H)
        gen_cols = jnp.concatenate([wgh[:, s], zHH], axis=0)      # (2H, H)
        con_cols = jnp.concatenate([zHH, wch[:, s]], axis=0)      # (2H, H)
        return jnp.concatenate([gen_cols, con_cols], axis=1)      # (2H, 2H)

    whh_rz = jnp.concatenate([blk(0), blk(1)], axis=1).astype(jnp.bfloat16)
    whh_n = blk(2).astype(jnp.bfloat16)
    bhhn = jnp.concatenate([pg['b_hh'][2 * H:],
                            pc['b_hh'][2 * H:]])[None, :].astype(jnp.float32)

    # ---- collapsed head (valid because Dropout is identity at inference) ----
    wfc_blk = jnp.zeros((2 * H, 2 * H), jnp.float32)
    wfc_blk = wfc_blk.at[:H, :H].set(params['fc_gen']['w'].T)
    wfc_blk = wfc_blk.at[H:, H:].set(params['fc_con']['w'].T)
    w_out_t = params['fc_out']['w'].T                              # (2H, OUT_DIM)
    w_head = (wfc_blk @ w_out_t).astype(jnp.float32)               # (2H, OUT_DIM)
    b_fc = jnp.concatenate([params['fc_gen']['b'], params['fc_con']['b']])
    b_head = (b_fc @ w_out_t + params['fc_out']['b'])[None, :].astype(jnp.float32)

    return dict(wx=wx, bx=bx, whh_rz=whh_rz, whh_n=whh_n, bhhn=bhhn,
                w_head=w_head, b_head=b_head)


def gru_model_forward(x_gen, x_con, prepared):
    """x_gen, x_con: (B, T) float32 — the dict values before unsqueeze(-1)."""
    B, T = x_gen.shape
    H = HIDDEN
    Bp = ((B + BATCH_PAD - 1) // BATCH_PAD) * BATCH_PAD

    # Only the tiny raw inputs are touched per call: stack, zero-pad the batch
    # (padded rows flow through the recurrence harmlessly and are sliced off),
    # and flatten time-major to (T*Bp, 2) for the in-kernel glue expansion.
    x = jnp.stack([x_gen, x_con], axis=-1).astype(jnp.float32)     # (B, T, 2)
    x = jnp.pad(x, ((0, Bp - B), (0, 0), (0, 0)))                  # (Bp, T, 2)
    x = jnp.transpose(x, (1, 0, 2)).reshape(T * Bp, 2)             # (T*Bp, 2)

    # Advisory cost estimate (tiny latency-bound kernel; lets XLA overlap it).
    flops = (2 * (T * Bp) * 2 * (6 * H)                 # glue expansion
             + T * 2 * Bp * (2 * H) * (6 * H)           # recurrence matmuls
             + T * 10 * Bp * (2 * H)                    # gate elementwise
             + 2 * Bp * (2 * H) * OUT_DIM)              # head
    transcendentals = T * Bp * (6 * H) + Bp * OUT_DIM
    bytes_accessed = (4 * (x.size + prepared['wx'].size + prepared['bx'].size
                           + prepared['bhhn'].size + prepared['w_head'].size
                           + prepared['b_head'].size + Bp * OUT_DIM)
                      + 2 * (prepared['whh_rz'].size + prepared['whh_n'].size))

    out = pl.pallas_call(
        functools.partial(fused_gru_kernel, T=T, B=Bp),
        out_shape=jax.ShapeDtypeStruct((Bp, OUT_DIM), jnp.float32),
        in_specs=[pl.BlockSpec(memory_space=pltpu.MemorySpace.VMEM)] * 8,
        out_specs=pl.BlockSpec(memory_space=pltpu.MemorySpace.VMEM),
        scratch_shapes=[pltpu.VMEM((T * Bp, 6 * H), jnp.float32)],
        cost_estimate=pl.CostEstimate(flops=flops,
                                      transcendentals=transcendentals,
                                      bytes_accessed=bytes_accessed),
    )(x, prepared['wx'], prepared['bx'], prepared['whh_rz'], prepared['whh_n'],
      prepared['bhhn'], prepared['w_head'], prepared['b_head'])

    return out[:B]


def reference_forward(x_gen, x_con, params):
    """Pure-JAX f32 reference mirroring the PyTorch forward (eval mode)."""
    H = HIDDEN

    def gru(x, p):
        B, T = x.shape
        h = jnp.zeros((B, H), jnp.float32)
        for t in range(T):
            xt = x[:, t:t + 1]
            gx = xt @ p['w_ih'].T + p['b_ih']
            gh = h @ p['w_hh'].T + p['b_hh']
            r = jax.nn.sigmoid(gx[:, :H] + gh[:, :H])
            z = jax.nn.sigmoid(gx[:, H:2 * H] + gh[:, H:2 * H])
            n = jnp.tanh(gx[:, 2 * H:] + r * gh[:, 2 * H:])
            h = (1.0 - z) * n + z * h
        return h

    hg = gru(x_gen, params['gru_gen'])
    hc = gru(x_con, params['gru_con'])
    fg = hg @ params['fc_gen']['w'].T + params['fc_gen']['b']
    fc = hc @ params['fc_con']['w'].T + params['fc_con']['b']
    cat = jnp.concatenate([fg, fc], axis=1)
    return jnp.tanh(cat @ params['fc_out']['w'].T + params['fc_out']['b'])


if __name__ == "__main__":
    B, T = 2, 8
    key = jax.random.PRNGKey(0)
    k_p, k_g, k_c = jax.random.split(key, 3)
    params = init_params(k_p)
    # The PyTorch module takes x = {'generation': (B, T), 'consumption': (B, T)}
    x_gen = jax.random.normal(k_g, (B, T), dtype=jnp.float32)
    x_con = jax.random.normal(k_c, (B, T), dtype=jnp.float32)

    prepared = prepare_params(params)          # one-time, parameter-only prep
    fwd = jax.jit(gru_model_forward)
    out = fwd(x_gen, x_con, prepared)
    out = jax.block_until_ready(out)

    ref = reference_forward(x_gen, x_con, params)
    assert out.shape == (B, OUT_DIM)
    # bf16 MXU operands in the recurrence + block-diagonal/head reassociation:
    # tolerance relaxed deliberately (typical error ~1e-3, bound well below 2e-2).
    assert jnp.allclose(out, ref, atol=2e-2, rtol=2e-2), (out, ref)

    # TODO(synk): nn.Dropout(0.1) is modeled as inference-mode identity only;
    # the collapsed head is only valid with dropout disabled.
    print("KERNEL_OK")
</pallas_src>

<mosaic_0001>
module attributes {stable_mosaic.version = 11 : i64} {
  func.func @fused_gru_kernel(%arg0: memref<128x2xf32, #tpu.memory_space<vmem>>, %arg1: memref<2x192xf32, #tpu.memory_space<vmem>>, %arg2: memref<1x192xf32, #tpu.memory_space<vmem>>, %arg3: memref<64x128xbf16, #tpu.memory_space<vmem>>, %arg4: memref<64x64xbf16, #tpu.memory_space<vmem>>, %arg5: memref<1x64xf32, #tpu.memory_space<vmem>>, %arg6: memref<64x2xf32, #tpu.memory_space<vmem>>, %arg7: memref<1x2xf32, #tpu.memory_space<vmem>>, %arg8: memref<16x2xf32, #tpu.memory_space<vmem>>, %arg9: memref<128x192xf32, #tpu.memory_space<vmem>>) attributes {dimension_semantics = [], scalar_prefetch = 0 : i64, scratch_operands = 1 : i64, tpu.core_type = #tpu.core_type<tc>} {
    %c0 = arith.constant 0 : index
    %c0_0 = arith.constant 0 : index
    %0 = vector.load %arg0[%c0, %c0_0] : memref<128x2xf32, #tpu.memory_space<vmem>>, vector<128x2xf32>
    %c0_1 = arith.constant 0 : index
    %c0_2 = arith.constant 0 : index
    %1 = vector.load %arg1[%c0_1, %c0_2] : memref<2x192xf32, #tpu.memory_space<vmem>>, vector<2x192xf32>
    %cst = arith.constant dense<0.000000e+00> : vector<128x192xf32>
    %2 = tpu.matmul %0, %1, %cst {dimension_numbers = #tpu.dot_dimension_numbers<[1], [0], [0], [1], [0, 0, 1, 1], [], []>} : vector<128x2xf32>, vector<2x192xf32>, vector<128x192xf32> -> vector<128x192xf32>
    %c0_3 = arith.constant 0 : index
    %c0_4 = arith.constant 0 : index
    %3 = vector.load %arg2[%c0_3, %c0_4] : memref<1x192xf32, #tpu.memory_space<vmem>>, vector<1x192xf32>
    %4 = vector.broadcast %3 : vector<1x192xf32> to vector<128x192xf32>
    %5 = arith.addf %2, %4 : vector<128x192xf32>
    %c0_5 = arith.constant 0 : index
    %c0_6 = arith.constant 0 : index
    %6 = vector.load %arg9[%c0_5, %c0_6] : memref<128x192xf32, #tpu.memory_space<vmem>>, vector<128x192xf32>
    tpu.vector_store %arg9[%c0_5, %c0_6], %5 {strides = array<i32>} : memref<128x192xf32, #tpu.memory_space<vmem>>, vector<128x192xf32>,
    %c0_7 = arith.constant 0 : index
    %c0_8 = arith.constant 0 : index
    %7 = vector.load %arg3[%c0_7, %c0_8] : memref<64x128xbf16, #tpu.memory_space<vmem>>, vector<64x128xbf16>
    %c0_9 = arith.constant 0 : index
    %c0_10 = arith.constant 0 : index
    %8 = vector.load %arg4[%c0_9, %c0_10] : memref<64x64xbf16, #tpu.memory_space<vmem>>, vector<64x64xbf16>
    %c0_11 = arith.constant 0 : index
    %c0_12 = arith.constant 0 : index
    %9 = vector.load %arg5[%c0_11, %c0_12] : memref<1x64xf32, #tpu.memory_space<vmem>>, vector<1x64xf32>
    %cst_13 = arith.constant 0.000000e+00 : f32
    %10 = vector.broadcast %cst_13 : f32 to vector<16x64xf32>
    %c0_i32 = arith.constant 0 : i32
    %c16_i32 = arith.constant 16 : i32
    %11 = arith.muli %c0_i32, %c16_i32 : i32
    %12 = tpu.assume_multiple %11, 16 : i32
    %13 = arith.index_cast %12 : i32 to index
    %c0_14 = arith.constant 0 : index
    %14 = vector.load %arg9[%13, %c0_14] : memref<128x192xf32, #tpu.memory_space<vmem>>, vector<16x192xf32>
    %15 = arith.truncf %10 : vector<16x64xf32> to vector<16x64xbf16>
    %cst_15 = arith.constant dense<0.000000e+00> : vector<16x128xf32>
    %16 = tpu.matmul %15, %7, %cst_15 {dimension_numbers = #tpu.dot_dimension_numbers<[1], [0], [0], [1], [0, 0, 1, 1], [], []>} : vector<16x64xbf16>, vector<64x128xbf16>, vector<16x128xf32> -> vector<16x128xf32>
    %cst_16 = arith.constant dense<0.000000e+00> : vector<16x64xf32>
    %17 = tpu.matmul %15, %8, %cst_16 {dimension_numbers = #tpu.dot_dimension_numbers<[1], [0], [0], [1], [0, 0, 1, 1], [], []>} : vector<16x64xbf16>, vector<64x64xbf16>, vector<16x64xf32> -> vector<16x64xf32>
    %18 = vector.extract_strided_slice %14 {offsets = [0, 0], sizes = [16, 128], strides = [1, 1]} : vector<16x192xf32> to vector<16x128xf32>
    %19 = arith.addf %18, %16 : vector<16x128xf32>
    %20 = arith.negf %19 : vector<16x128xf32>
    %21 = math.exp %20 : vector<16x128xf32>
    %cst_17 = arith.constant 1.000000e+00 : f32
    %22 = vector.broadcast %cst_17 : f32 to vector<16x128xf32>
    %23 = arith.addf %22, %21 : vector<16x128xf32>
    %24 = arith.divf %22, %23 : vector<16x128xf32>
    %25 = vector.extract_strided_slice %24 {offsets = [0, 0], sizes = [16, 64], strides = [1, 1]} : vector<16x128xf32> to vector<16x64xf32>
    %26 = vector.extract_strided_slice %24 {offsets = [0, 64], sizes = [16, 64], strides = [1, 1]} : vector<16x128xf32> to vector<16x64xf32>
    %27 = vector.extract_strided_slice %14 {offsets = [0, 128], sizes = [16, 64], strides = [1, 1]} : vector<16x192xf32> to vector<16x64xf32>
    %28 = vector.broadcast %9 : vector<1x64xf32> to vector<16x64xf32>
    %29 = arith.addf %17, %28 : vector<16x64xf32>
    %30 = arith.mulf %25, %29 : vector<16x64xf32>
    %31 = arith.addf %27, %30 : vector<16x64xf32>
    %32 = math.tanh %31 : vector<16x64xf32>
    %33 = arith.subf %10, %32 : vector<16x64xf32>
    %34 = arith.mulf %26, %33 : vector<16x64xf32>
    %35 = arith.addf %32, %34 : vector<16x64xf32>
    %c1_i32 = arith.constant 1 : i32
    %c16_i32_18 = arith.constant 16 : i32
    %36 = arith.muli %c1_i32, %c16_i32_18 : i32
    %37 = tpu.assume_multiple %36, 16 : i32
    %38 = arith.index_cast %37 : i32 to index
    %c0_19 = arith.constant 0 : index
    %39 = vector.load %arg9[%38, %c0_19] : memref<128x192xf32, #tpu.memory_space<vmem>>, vector<16x192xf32>
    %40 = arith.truncf %35 : vector<16x64xf32> to vector<16x64xbf16>
    %cst_20 = arith.constant dense<0.000000e+00> : vector<16x128xf32>
    %41 = tpu.matmul %40, %7, %cst_20 {dimension_numbers = #tpu.dot_dimension_numbers<[1], [0], [0], [1], [0, 0, 1, 1], [], []>} : vector<16x64xbf16>, vector<64x128xbf16>, vector<16x128xf32> -> vector<16x128xf32>
    %cst_21 = arith.constant dense<0.000000e+00> : vector<16x64xf32>
    %42 = tpu.matmul %40, %8, %cst_21 {dimension_numbers = #tpu.dot_dimension_numbers<[1], [0], [0], [1], [0, 0, 1, 1], [], []>} : vector<16x64xbf16>, vector<64x64xbf16>, vector<16x64xf32> -> vector<16x64xf32>
    %43 = vector.extract_strided_slice %39 {offsets = [0, 0], sizes = [16, 128], strides = [1, 1]} : vector<16x192xf32> to vector<16x128xf32>
    %44 = arith.addf %43, %41 : vector<16x128xf32>
    %45 = arith.negf %44 : vector<16x128xf32>
    %46 = math.exp %45 : vector<16x128xf32>
    %cst_22 = arith.constant 1.000000e+00 : f32
    %47 = vector.broadcast %cst_22 : f32 to vector<16x128xf32>
    %48 = arith.addf %47, %46 : vector<16x128xf32>
    %49 = arith.divf %47, %48 : vector<16x128xf32>
    %50 = vector.extract_strided_slice %49 {offsets = [0, 0], sizes = [16, 64], strides = [1, 1]} : vector<16x128xf32> to vector<16x64xf32>
    %51 = vector.extract_strided_slice %49 {offsets = [0, 64], sizes = [16, 64], strides = [1, 1]} : vector<16x128xf32> to vector<16x64xf32>
    %52 = vector.extract_strided_slice %39 {offsets = [0, 128], sizes = [16, 64], strides = [1, 1]} : vector<16x192xf32> to vector<16x64xf32>
    %53 = vector.broadcast %9 : vector<1x64xf32> to vector<16x64xf32>
    %54 = arith.addf %42, %53 : vector<16x64xf32>
    %55 = arith.mulf %50, %54 : vector<16x64xf32>
    %56 = arith.addf %52, %55 : vector<16x64xf32>
    %57 = math.tanh %56 : vector<16x64xf32>
    %58 = arith.subf %35, %57 : vector<16x64xf32>
    %59 = arith.mulf %51, %58 : vector<16x64xf32>
    %60 = arith.addf %57, %59 : vector<16x64xf32>
    %c2_i32 = arith.constant 2 : i32
    %c16_i32_23 = arith.constant 16 : i32
    %61 = arith.muli %c2_i32, %c16_i32_23 : i32
    %62 = tpu.assume_multiple %61, 16 : i32
    %63 = arith.index_cast %62 : i32 to index
    %c0_24 = arith.constant 0 : index
    %64 = vector.load %arg9[%63, %c0_24] : memref<128x192xf32, #tpu.memory_space<vmem>>, vector<16x192xf32>
    %65 = arith.truncf %60 : vector<16x64xf32> to vector<16x64xbf16>
    %cst_25 = arith.constant dense<0.000000e+00> : vector<16x128xf32>
    %66 = tpu.matmul %65, %7, %cst_25 {dimension_numbers = #tpu.dot_dimension_numbers<[1], [0], [0], [1], [0, 0, 1, 1], [], []>} : vector<16x64xbf16>, vector<64x128xbf16>, vector<16x128xf32> -> vector<16x128xf32>
    %cst_26 = arith.constant dense<0.000000e+00> : vector<16x64xf32>
    %67 = tpu.matmul %65, %8, %cst_26 {dimension_numbers = #tpu.dot_dimension_numbers<[1], [0], [0], [1], [0, 0, 1, 1], [], []>} : vector<16x64xbf16>, vector<64x64xbf16>, vector<16x64xf32> -> vector<16x64xf32>
    %68 = vector.extract_strided_slice %64 {offsets = [0, 0], sizes = [16, 128], strides = [1, 1]} : vector<16x192xf32> to vector<16x128xf32>
    %69 = arith.addf %68, %66 : vector<16x128xf32>
    %70 = arith.negf %69 : vector<16x128xf32>
    %71 = math.exp %70 : vector<16x128xf32>
    %cst_27 = arith.constant 1.000000e+00 : f32
    %72 = vector.broadcast %cst_27 : f32 to vector<16x128xf32>
    %73 = arith.addf %72, %71 : vector<16x128xf32>
    %74 = arith.divf %72, %73 : vector<16x128xf32>
    %75 = vector.extract_strided_slice %74 {offsets = [0, 0], sizes = [16, 64], strides = [1, 1]} : vector<16x128xf32> to vector<16x64xf32>
    %76 = vector.extract_strided_slice %74 {offsets = [0, 64], sizes = [16, 64], strides = [1, 1]} : vector<16x128xf32> to vector<16x64xf32>
    %77 = vector.extract_strided_slice %64 {offsets = [0, 128], sizes = [16, 64], strides = [1, 1]} : vector<16x192xf32> to vector<16x64xf32>
    %78 = vector.broadcast %9 : vector<1x64xf32> to vector<16x64xf32>
    %79 = arith.addf %67, %78 : vector<16x64xf32>
    %80 = arith.mulf %75, %79 : vector<16x64xf32>
    %81 = arith.addf %77, %80 : vector<16x64xf32>
    %82 = math.tanh %81 : vector<16x64xf32>
    %83 = arith.subf %60, %82 : vector<16x64xf32>
    %84 = arith.mulf %76, %83 : vector<16x64xf32>
    %85 = arith.addf %82, %84 : vector<16x64xf32>
    %c3_i32 = arith.constant 3 : i32
    %c16_i32_28 = arith.constant 16 : i32
    %86 = arith.muli %c3_i32, %c16_i32_28 : i32
    %87 = tpu.assume_multiple %86, 16 : i32
    %88 = arith.index_cast %87 : i32 to index
    %c0_29 = arith.constant 0 : index
    %89 = vector.load %arg9[%88, %c0_29] : memref<128x192xf32, #tpu.memory_space<vmem>>, vector<16x192xf32>
    %90 = arith.truncf %85 : vector<16x64xf32> to vector<16x64xbf16>
    %cst_30 = arith.constant dense<0.000000e+00> : vector<16x128xf32>
    %91 = tpu.matmul %90, %7, %cst_30 {dimension_numbers = #tpu.dot_dimension_numbers<[1], [0], [0], [1], [0, 0, 1, 1], [], []>} : vector<16x64xbf16>, vector<64x128xbf16>, vector<16x128xf32> -> vector<16x128xf32>
    %cst_31 = arith.constant dense<0.000000e+00> : vector<16x64xf32>
    %92 = tpu.matmul %90, %8, %cst_31 {dimension_numbers = #tpu.dot_dimension_numbers<[1], [0], [0], [1], [0, 0, 1, 1], [], []>} : vector<16x64xbf16>, vector<64x64xbf16>, vector<16x64xf32> -> vector<16x64xf32>
    %93 = vector.extract_strided_slice %89 {offsets = [0, 0], sizes = [16, 128], strides = [1, 1]} : vector<16x192xf32> to vector<16x128xf32>
    %94 = arith.addf %93, %91 : vector<16x128xf32>
    %95 = arith.negf %94 : vector<16x128xf32>
    %96 = math.exp %95 : vector<16x128xf32>
    %cst_32 = arith.constant 1.000000e+00 : f32
    %97 = vector.broadcast %cst_32 : f32 to vector<16x128xf32>
    %98 = arith.addf %97, %96 : vector<16x128xf32>
    %99 = arith.divf %97, %98 : vector<16x128xf32>
    %100 = vector.extract_strided_slice %99 {offsets = [0, 0], sizes = [16, 64], strides = [1, 1]} : vector<16x128xf32> to vector<16x64xf32>
    %101 = vector.extract_strided_slice %99 {offsets = [0, 64], sizes = [16, 64], strides = [1, 1]} : vector<16x128xf32> to vector<16x64xf32>
    %102 = vector.extract_strided_slice %89 {offsets = [0, 128], sizes = [16, 64], strides = [1, 1]} : vector<16x192xf32> to vector<16x64xf32>
    %103 = vector.broadcast %9 : vector<1x64xf32> to vector<16x64xf32>
    %104 = arith.addf %92, %103 : vector<16x64xf32>
    %105 = arith.mulf %100, %104 : vector<16x64xf32>
    %106 = arith.addf %102, %105 : vector<16x64xf32>
    %107 = math.tanh %106 : vector<16x64xf32>
    %108 = arith.subf %85, %107 : vector<16x64xf32>
    %109 = arith.mulf %101, %108 : vector<16x64xf32>
    %110 = arith.addf %107, %109 : vector<16x64xf32>
    %c4_i32 = arith.constant 4 : i32
    %c16_i32_33 = arith.constant 16 : i32
    %111 = arith.muli %c4_i32, %c16_i32_33 : i32
    %112 = tpu.assume_multiple %111, 16 : i32
    %113 = arith.index_cast %112 : i32 to index
    %c0_34 = arith.constant 0 : index
    %114 = vector.load %arg9[%113, %c0_34] : memref<128x192xf32, #tpu.memory_space<vmem>>, vector<16x192xf32>
    %115 = arith.truncf %110 : vector<16x64xf32> to vector<16x64xbf16>
    %cst_35 = arith.constant dense<0.000000e+00> : vector<16x128xf32>
    %116 = tpu.matmul %115, %7, %cst_35 {dimension_numbers = #tpu.dot_dimension_numbers<[1], [0], [0], [1], [0, 0, 1, 1], [], []>} : vector<16x64xbf16>, vector<64x128xbf16>, vector<16x128xf32> -> vector<16x128xf32>
    %cst_36 = arith.constant dense<0.000000e+00> : vector<16x64xf32>
    %117 = tpu.matmul %115, %8, %cst_36 {dimension_numbers = #tpu.dot_dimension_numbers<[1], [0], [0], [1], [0, 0, 1, 1], [], []>} : vector<16x64xbf16>, vector<64x64xbf16>, vector<16x64xf32> -> vector<16x64xf32>
    %118 = vector.extract_strided_slice %114 {offsets = [0, 0], sizes = [16, 128], strides = [1, 1]} : vector<16x192xf32> to vector<16x128xf32>
    %119 = arith.addf %118, %116 : vector<16x128xf32>
    %120 = arith.negf %119 : vector<16x128xf32>
    %121 = math.exp %120 : vector<16x128xf32>
    %cst_37 = arith.constant 1.000000e+00 : f32
    %122 = vector.broadcast %cst_37 : f32 to vector<16x128xf32>
    %123 = arith.addf %122, %121 : vector<16x128xf32>
    %124 = arith.divf %122, %123 : vector<16x128xf32>
    %125 = vector.extract_strided_slice %124 {offsets = [0, 0], sizes = [16, 64], strides = [1, 1]} : vector<16x128xf32> to vector<16x64xf32>
    %126 = vector.extract_strided_slice %124 {offsets = [0, 64], sizes = [16, 64], strides = [1, 1]} : vector<16x128xf32> to vector<16x64xf32>
    %127 = vector.extract_strided_slice %114 {offsets = [0, 128], sizes = [16, 64], strides = [1, 1]} : vector<16x192xf32> to vector<16x64xf32>
    %128 = vector.broadcast %9 : vector<1x64xf32> to vector<16x64xf32>
    %129 = arith.addf %117, %128 : vector<16x64xf32>
    %130 = arith.mulf %125, %129 : vector<16x64xf32>
    %131 = arith.addf %127, %130 : vector<16x64xf32>
    %132 = math.tanh %131 : vector<16x64xf32>
    %133 = arith.subf %110, %132 : vector<16x64xf32>
    %134 = arith.mulf %126, %133 : vector<16x64xf32>
    %135 = arith.addf %132, %134 : vector<16x64xf32>
    %c5_i32 = arith.constant 5 : i32
    %c16_i32_38 = arith.constant 16 : i32
    %136 = arith.muli %c5_i32, %c16_i32_38 : i32
    %137 = tpu.assume_multiple %136, 16 : i32
    %138 = arith.index_cast %137 : i32 to index
    %c0_39 = arith.constant 0 : index
    %139 = vector.load %arg9[%138, %c0_39] : memref<128x192xf32, #tpu.memory_space<vmem>>, vector<16x192xf32>
    %140 = arith.truncf %135 : vector<16x64xf32> to vector<16x64xbf16>
    %cst_40 = arith.constant dense<0.000000e+00> : vector<16x128xf32>
    %141 = tpu.matmul %140, %7, %cst_40 {dimension_numbers = #tpu.dot_dimension_numbers<[1], [0], [0], [1], [0, 0, 1, 1], [], []>} : vector<16x64xbf16>, vector<64x128xbf16>, vector<16x128xf32> -> vector<16x128xf32>
    %cst_41 = arith.constant dense<0.000000e+00> : vector<16x64xf32>
    %142 = tpu.matmul %140, %8, %cst_41 {dimension_numbers = #tpu.dot_dimension_numbers<[1], [0], [0], [1], [0, 0, 1, 1], [], []>} : vector<16x64xbf16>, vector<64x64xbf16>, vector<16x64xf32> -> vector<16x64xf32>
    %143 = vector.extract_strided_slice %139 {offsets = [0, 0], sizes = [16, 128], strides = [1, 1]} : vector<16x192xf32> to vector<16x128xf32>
    %144 = arith.addf %143, %141 : vector<16x128xf32>
    %145 = arith.negf %144 : vector<16x128xf32>
    %146 = math.exp %145 : vector<16x128xf32>
    %cst_42 = arith.constant 1.000000e+00 : f32
    %147 = vector.broadcast %cst_42 : f32 to vector<16x128xf32>
    %148 = arith.addf %147, %146 : vector<16x128xf32>
    %149 = arith.divf %147, %148 : vector<16x128xf32>
    %150 = vector.extract_strided_slice %149 {offsets = [0, 0], sizes = [16, 64], strides = [1, 1]} : vector<16x128xf32> to vector<16x64xf32>
    %151 = vector.extract_strided_slice %149 {offsets = [0, 64], sizes = [16, 64], strides = [1, 1]} : vector<16x128xf32> to vector<16x64xf32>
    %152 = vector.extract_strided_slice %139 {offsets = [0, 128], sizes = [16, 64], strides = [1, 1]} : vector<16x192xf32> to vector<16x64xf32>
    %153 = vector.broadcast %9 : vector<1x64xf32> to vector<16x64xf32>
    %154 = arith.addf %142, %153 : vector<16x64xf32>
    %155 = arith.mulf %150, %154 : vector<16x64xf32>
    %156 = arith.addf %152, %155 : vector<16x64xf32>
    %157 = math.tanh %156 : vector<16x64xf32>
    %158 = arith.subf %135, %157 : vector<16x64xf32>
    %159 = arith.mulf %151, %158 : vector<16x64xf32>
    %160 = arith.addf %157, %159 : vector<16x64xf32>
    %c6_i32 = arith.constant 6 : i32
    %c16_i32_43 = arith.constant 16 : i32
    %161 = arith.muli %c6_i32, %c16_i32_43 : i32
    %162 = tpu.assume_multiple %161, 16 : i32
    %163 = arith.index_cast %162 : i32 to index
    %c0_44 = arith.constant 0 : index
    %164 = vector.load %arg9[%163, %c0_44] : memref<128x192xf32, #tpu.memory_space<vmem>>, vector<16x192xf32>
    %165 = arith.truncf %160 : vector<16x64xf32> to vector<16x64xbf16>
    %cst_45 = arith.constant dense<0.000000e+00> : vector<16x128xf32>
    %166 = tpu.matmul %165, %7, %cst_45 {dimension_numbers = #tpu.dot_dimension_numbers<[1], [0], [0], [1], [0, 0, 1, 1], [], []>} : vector<16x64xbf16>, vector<64x128xbf16>, vector<16x128xf32> -> vector<16x128xf32>
    %cst_46 = arith.constant dense<0.000000e+00> : vector<16x64xf32>
    %167 = tpu.matmul %165, %8, %cst_46 {dimension_numbers = #tpu.dot_dimension_numbers<[1], [0], [0], [1], [0, 0, 1, 1], [], []>} : vector<16x64xbf16>, vector<64x64xbf16>, vector<16x64xf32> -> vector<16x64xf32>
    %168 = vector.extract_strided_slice %164 {offsets = [0, 0], sizes = [16, 128], strides = [1, 1]} : vector<16x192xf32> to vector<16x128xf32>
    %169 = arith.addf %168, %166 : vector<16x128xf32>
    %170 = arith.negf %169 : vector<16x128xf32>
    %171 = math.exp %170 : vector<16x128xf32>
    %cst_47 = arith.constant 1.000000e+00 : f32
    %172 = vector.broadcast %cst_47 : f32 to vector<16x128xf32>
    %173 = arith.addf %172, %171 : vector<16x128xf32>
    %174 = arith.divf %172, %173 : vector<16x128xf32>
    %175 = vector.extract_strided_slice %174 {offsets = [0, 0], sizes = [16, 64], strides = [1, 1]} : vector<16x128xf32> to vector<16x64xf32>
    %176 = vector.extract_strided_slice %174 {offsets = [0, 64], sizes = [16, 64], strides = [1, 1]} : vector<16x128xf32> to vector<16x64xf32>
    %177 = vector.extract_strided_slice %164 {offsets = [0, 128], sizes = [16, 64], strides = [1, 1]} : vector<16x192xf32> to vector<16x64xf32>
    %178 = vector.broadcast %9 : vector<1x64xf32> to vector<16x64xf32>
    %179 = arith.addf %167, %178 : vector<16x64xf32>
    %180 = arith.mulf %175, %179 : vector<16x64xf32>
    %181 = arith.addf %177, %180 : vector<16x64xf32>
    %182 = math.tanh %181 : vector<16x64xf32>
    %183 = arith.subf %160, %182 : vector<16x64xf32>
    %184 = arith.mulf %176, %183 : vector<16x64xf32>
    %185 = arith.addf %182, %184 : vector<16x64xf32>
    %c7_i32 = arith.constant 7 : i32
    %c16_i32_48 = arith.constant 16 : i32
    %186 = arith.muli %c7_i32, %c16_i32_48 : i32
    %187 = tpu.assume_multiple %186, 16 : i32
    %188 = arith.index_cast %187 : i32 to index
    %c0_49 = arith.constant 0 : index
    %189 = vector.load %arg9[%188, %c0_49] : memref<128x192xf32, #tpu.memory_space<vmem>>, vector<16x192xf32>
    %190 = arith.truncf %185 : vector<16x64xf32> to vector<16x64xbf16>
    %cst_50 = arith.constant dense<0.000000e+00> : vector<16x128xf32>
    %191 = tpu.matmul %190, %7, %cst_50 {dimension_numbers = #tpu.dot_dimension_numbers<[1], [0], [0], [1], [0, 0, 1, 1], [], []>} : vector<16x64xbf16>, vector<64x128xbf16>, vector<16x128xf32> -> vector<16x128xf32>
    %cst_51 = arith.constant dense<0.000000e+00> : vector<16x64xf32>
    %192 = tpu.matmul %190, %8, %cst_51 {dimension_numbers = #tpu.dot_dimension_numbers<[1], [0], [0], [1], [0, 0, 1, 1], [], []>} : vector<16x64xbf16>, vector<64x64xbf16>, vector<16x64xf32> -> vector<16x64xf32>
    %193 = vector.extract_strided_slice %189 {offsets = [0, 0], sizes = [16, 128], strides = [1, 1]} : vector<16x192xf32> to vector<16x128xf32>
    %194 = arith.addf %193, %191 : vector<16x128xf32>
    %195 = arith.negf %194 : vector<16x128xf32>
    %196 = math.exp %195 : vector<16x128xf32>
    %cst_52 = arith.constant 1.000000e+00 : f32
    %197 = vector.broadcast %cst_52 : f32 to vector<16x128xf32>
    %198 = arith.addf %197, %196 : vector<16x128xf32>
    %199 = arith.divf %197, %198 : vector<16x128xf32>
    %200 = vector.extract_strided_slice %199 {offsets = [0, 0], sizes = [16, 64], strides = [1, 1]} : vector<16x128xf32> to vector<16x64xf32>
    %201 = vector.extract_strided_slice %199 {offsets = [0, 64], sizes = [16, 64], strides = [1, 1]} : vector<16x128xf32> to vector<16x64xf32>
    %202 = vector.extract_strided_slice %189 {offsets = [0, 128], sizes = [16, 64], strides = [1, 1]} : vector<16x192xf32> to vector<16x64xf32>
    %203 = vector.broadcast %9 : vector<1x64xf32> to vector<16x64xf32>
    %204 = arith.addf %192, %203 : vector<16x64xf32>
    %205 = arith.mulf %200, %204 : vector<16x64xf32>
    %206 = arith.addf %202, %205 : vector<16x64xf32>
    %207 = math.tanh %206 : vector<16x64xf32>
    %208 = arith.subf %185, %207 : vector<16x64xf32>
    %209 = arith.mulf %201, %208 : vector<16x64xf32>
    %210 = arith.addf %207, %209 : vector<16x64xf32>
    %c8_i32 = arith.constant 8 : i32
    %c0_53 = arith.constant 0 : index
    %c0_54 = arith.constant 0 : index
    %211 = vector.load %arg6[%c0_53, %c0_54] : memref<64x2xf32, #tpu.memory_space<vmem>>, vector<64x2xf32>
    %cst_55 = arith.constant dense<0.000000e+00> : vector<16x2xf32>
    %212 = tpu.matmul %210, %211, %cst_55 {dimension_numbers = #tpu.dot_dimension_numbers<[1], [0], [0], [1], [0, 0, 1, 1], [], []>} : vector<16x64xf32>, vector<64x2xf32>, vector<16x2xf32> -> vector<16x2xf32>
    %c0_56 = arith.constant 0 : index
    %c0_57 = arith.constant 0 : index
    %213 = vector.load %arg7[%c0_56, %c0_57] : memref<1x2xf32, #tpu.memory_space<vmem>>, vector<1x2xf32>
    %214 = vector.broadcast %213 : vector<1x2xf32> to vector<16x2xf32>
    %215 = arith.addf %212, %214 : vector<16x2xf32>
    %216 = math.tanh %215 : vector<16x2xf32>
    %c0_58 = arith.constant 0 : index
    %c0_59 = arith.constant 0 : index
    %217 = vector.load %arg8[%c0_58, %c0_59] : memref<16x2xf32, #tpu.memory_space<vmem>>, vector<16x2xf32>
    tpu.vector_store %arg8[%c0_58, %c0_59], %216 {strides = array<i32>} : memref<16x2xf32, #tpu.memory_space<vmem>>, vector<16x2xf32>,
    return
  }
}

</mosaic_0001>

<llo_original>
// kernel: gru_model_forward.1
$region0: #{gru_model_forward.1}
  #allocation0 [shape = 'u32[]', space=smem, size = 0x4, offset = 0x4, fixed_abs, tag = 'smem constant byte address 0x4 - core index']
  #allocation1 [shape = 'u32[144,128]{1,0:T(1,128)}', space=vmem, size = 0x12000, scoped, tag = 'internal scratch']
  #allocation2 [shape = 'f32[128,192]{1,0:T(8,128)}', space=vmem, size = 0x20000, scoped, tag = 'scratch operand']
  %s0 = inlined_call_operand.vmem [shape: f32[128,2], index: 0, kind: input, shape index: {}]
  %s1 = inlined_call_operand.vmem [shape: f32[2,192], index: 1, kind: input, shape index: {}]
  %s2 = inlined_call_operand.vmem [shape: f32[1,192], index: 2, kind: input, shape index: {}]
  %s3 = inlined_call_operand.vmem [shape: bf16[64,128], index: 3, kind: input, shape index: {}]
  %s4 = inlined_call_operand.vmem [shape: bf16[64,64], index: 4, kind: input, shape index: {}]
  %s5 = inlined_call_operand.vmem [shape: f32[1,64], index: 5, kind: input, shape index: {}]
  %s6 = inlined_call_operand.vmem [shape: f32[64,2], index: 6, kind: input, shape index: {}]
  %s7 = inlined_call_operand.vmem [shape: f32[1,2], index: 7, kind: input, shape index: {}]
  %s8 = inlined_call_operand.vmem [shape: f32[16,2], index: 8, kind: output, shape index: {}]
  %s9 = sld [smem:[#allocation0]]
  $region42: #{gru_model_forward.1} parent=0
    _
  %s11 = ssub.s32 1, %s9
  %s12 = scalar_select 0, %s11, %s9
  // Predicated region
  $region2: #{gru_model_forward.1} parent=0 // pred_check
    _
  $region3: #{gru_model_forward.1} parent=0 // pred_check_branch
    %14 = sbr.rel (0) target = $region5
  $region4: #{gru_model_forward.1} parent=0 // pred_region
    _
  $region5: #{gru_model_forward.1} parent=0 // pred_fallthru
    _
  // Predicated region
  $region6: #{gru_model_forward.1} parent=0 // pred_check
    _
  $region7: #{gru_model_forward.1} parent=0 // pred_check_branch
    %16 = sbr.rel (0) target = $region9
  $region8: #{gru_model_forward.1} parent=0 // pred_region
    _
  $region9: #{gru_model_forward.1} parent=0 // pred_fallthru
    _
  // Predicated region
  $region10: #{gru_model_forward.1} parent=0 // pred_check
    _
  $region11: #{gru_model_forward.1} parent=0 // pred_check_branch
    %18 = sbr.rel (0) target = $region13
  $region12: #{gru_model_forward.1} parent=0 // pred_region
    _
  $region13: #{gru_model_forward.1} parent=0 // pred_fallthru
    _
  // Predicated region
  $region14: #{gru_model_forward.1} parent=0 // pred_check
    _
  $region15: #{gru_model_forward.1} parent=0 // pred_check_branch
    %20 = sbr.rel (0) target = $region17
  $region16: #{gru_model_forward.1} parent=0 // pred_region
    _
  $region17: #{gru_model_forward.1} parent=0 // pred_fallthru
    _
  // Predicated region
  $region18: #{gru_model_forward.1} parent=0 // pred_check
    _
  $region19: #{gru_model_forward.1} parent=0 // pred_check_branch
    %22 = sbr.rel (0) target = $region21
  $region20: #{gru_model_forward.1} parent=0 // pred_region
    _
  $region21: #{gru_model_forward.1} parent=0 // pred_fallthru
    _
  // Predicated region
  $region22: #{gru_model_forward.1} parent=0 // pred_check
    _
  $region23: #{gru_model_forward.1} parent=0 // pred_check_branch
    %24 = sbr.rel (0) target = $region25
  $region24: #{gru_model_forward.1} parent=0 // pred_region
    _
  $region25: #{gru_model_forward.1} parent=0 // pred_fallthru
    _
  // Predicated region
  $region26: #{gru_model_forward.1} parent=0 // pred_check
    _
  $region27: #{gru_model_forward.1} parent=0 // pred_check_branch
    %26 = sbr.rel (0) target = $region29
  $region28: #{gru_model_forward.1} parent=0 // pred_region
    _
  $region29: #{gru_model_forward.1} parent=0 // pred_fallthru
    _
  // Predicated region
  $region30: #{gru_model_forward.1} parent=0 // pred_check
    _
  $region31: #{gru_model_forward.1} parent=0 // pred_check_branch
    %28 = sbr.rel (0) target = $region33
  $region32: #{gru_model_forward.1} parent=0 // pred_region
    _
  $region33: #{gru_model_forward.1} parent=0 // pred_fallthru
    _
  %v30 = vld [vmem:[%s0] sm:$0xff]
  %v31 = vld [vmem:[%s0 + $0x8] sm:$0xff]
  %v32 = vld [vmem:[%s0 + $0x10] sm:$0xff]
  %v33 = vld [vmem:[%s0 + $0x18] sm:$0xff]
  %v34 = vld [vmem:[%s0 + $0x20] sm:$0xff]
  %v35 = vld [vmem:[%s0 + $0x28] sm:$0xff]
  %v36 = vld [vmem:[%s0 + $0x30] sm:$0xff]
  %v37 = vld [vmem:[%s0 + $0x38] sm:$0xff]
  %v38 = vld [vmem:[%s0 + $0x40] sm:$0xff]
  %v39 = vld [vmem:[%s0 + $0x48] sm:$0xff]
  %v40 = vld [vmem:[%s0 + $0x50] sm:$0xff]
  %v41 = vld [vmem:[%s0 + $0x58] sm:$0xff]
  %v42 = vld [vmem:[%s0 + $0x60] sm:$0xff]
  %v43 = vld [vmem:[%s0 + $0x68] sm:$0xff]
  %v44 = vld [vmem:[%s0 + $0x70] sm:$0xff]
  %v45 = vld [vmem:[%s0 + $0x78] sm:$0xff]
  %v46 = vld [vmem:[%s1] sm:$0xf]
  %v47 = vld [vmem:[%s2] sm:$0x3]
  %v49 = vlaneseq
  %v50 = vshrl.u32 %v49, 7
  %v51 = vsub.s32 0, %v50
  %v52 = vrot.slane %v47, %v51
  %v53 = vlaneseq
  %v54 = vshrl.u32 %v53, 7
  %v55 = vsub.s32 1, %v54
  %v56 = vrot.slane %v47, %v55
  %v61 = vunpack.c.l.s4 1983009808
  %v62 = vunpack.c.0.s8 %v61
  %v63 = vlaneseq
  %v64 = vshrl.u32 %v63, 7
  %v65 = vsub.s32 %v62, %v64
  %v66 = vrot.slane %v46, %v65
  %v67 = vcombine.high %v66, %v66
  %vm68 = vcmask 15360
  %v70 = vsel %vm68, %v30, 0
  %v73 = vsel %vm68, %v31, 0
  %v76 = vsel %vm68, %v32, 0
  %v79 = vsel %vm68, %v33, 0
  %v82 = vsel %vm68, %v34, 0
  %v85 = vsel %vm68, %v35, 0
  %v88 = vsel %vm68, %v36, 0
  %v91 = vsel %vm68, %v37, 0
  %v94 = vsel %vm68, %v38, 0
  %v97 = vsel %vm68, %v39, 0
  %v100 = vsel %vm68, %v40, 0
  %v103 = vsel %vm68, %v41, 0
  %v106 = vsel %vm68, %v42, 0
  %v109 = vsel %vm68, %v43, 0
  %v112 = vsel %vm68, %v44, 0
  %v115 = vsel %vm68, %v45, 0
  %vm117 = vcmask 1041408
  %v118 = vsel %vm117, %v66, 0
  %v120 = vsel %vm117, %v67, 0
  %122 = vmatprep.subr.mxu0 %v120
  %123 = vmatpush1.msra.mxu0 %v118
  %124 = vmatprep.subr.mxu0 0.0
  %125 = vmatpush1.msra.mxu0 0.0
  %126 = vmatprep.subr.mxu0 0.0
  %127 = vmatpush1.msra.mxu0 0.0
  %128 = vmatprep.subr.mxu0 0.0
  %129 = vmatpush1.msra.mxu0 0.0
  %130 = vmatprep.subr.mxu0 0.0
  %131 = vmatpush1.msra.mxu0 0.0
  %132 = vmatprep.subr.mxu0 0.0
  %133 = vmatpush1.msra.mxu0 0.0
  %134 = vmatprep.subr.mxu0 0.0
  %135 = vmatpush1.msra.mxu0 0.0
  %136 = vmatprep.subr.mxu0 0.0
  %137 = vmatpush1.msra.mxu0 0.0
  %138 = vmatprep.subr.mxu0 0.0
  %139 = vmatpush1.msra.mxu0 0.0
  %140 = vmatprep.subr.mxu0 0.0
  %141 = vmatpush1.msra.mxu0 0.0
  %142 = vmatprep.subr.mxu0 0.0
  %143 = vmatpush1.msra.mxu0 0.0
  %144 = vmatprep.subr.mxu0 0.0
  %145 = vmatpush1.msra.mxu0 0.0
  %146 = vmatprep.subr.mxu0 0.0
  %147 = vmatpush1.msra.mxu0 0.0
  %148 = vmatprep.subr.mxu0 0.0
  %149 = vmatpush1.msra.mxu0 0.0
  %150 = vmatprep.subr.mxu0 0.0
  %151 = vmatpush1.msra.mxu0 0.0
  %152 = vmatprep.subr.mxu0 0.0
  %153 = vmatpush1.msra.mxu0 0.0
  %154 = vmatprep.subr.mxu0 0.0
  %155 = vmatpush1.msra.mxu0 0.0
  %156 = vmatprep.subr.mxu0 0.0
  %157 = vmatpush1.msra.mxu0 0.0
  %158 = vmatprep.subr.mxu0 0.0
  %159 = vmatpush1.msra.mxu0 0.0
  %160 = vmatprep.subr.mxu0 0.0
  %161 = vmatpush1.msra.mxu0 0.0
  %162 = vmatprep.subr.mxu0 0.0
  %163 = vmatpush1.msra.mxu0 0.0
  %164 = vmatprep.subr.mxu0 0.0
  %165 = vmatpush1.msra.mxu0 0.0
  %166 = vmatprep.subr.mxu0 0.0
  %167 = vmatpush1.msra.mxu0 0.0
  %168 = vmatprep.subr.mxu0 0.0
  %169 = vmatpush1.msra.mxu0 0.0
  %170 = vmatprep.subr.mxu0 0.0
  %171 = vmatpush1.msra.mxu0 0.0
  %172 = vmatprep.subr.mxu0 0.0
  %173 = vmatpush1.msra.mxu0 0.0
  %174 = vmatprep.subr.mxu0 0.0
  %175 = vmatpush1.msra.mxu0 0.0
  %176 = vmatprep.subr.mxu0 0.0
  %177 = vmatpush1.msra.mxu0 0.0
  %178 = vmatprep.subr.mxu0 0.0
  %179 = vmatpush1.msra.mxu0 0.0
  %180 = vmatprep.subr.mxu0 0.0
  %181 = vmatpush1.msra.mxu0 0.0
  %182 = vmatprep.subr.mxu0 0.0
  %183 = vmatpush1.msra.mxu0 0.0
  %184 = vmatprep.subr.mxu0 0.0
  %185 = vmatpush1.msra.mxu0 0.0
  %186 = vmatprep.mubr.f32.mxu0 0.0
  %187 = vmatmul.mubr.f32.gmra.mrb[0].mxu0 %v70
  %v188 = vpop.f32.mrb[0].mxu0
  %v189 = vadd.f32 %v52, %v188
  %v190 = vpop.f32.mrb[0].mxu0
  %v191 = vadd.f32 %v56, %v190
  %192 = vmatprep.mubr.f32.mxu0 0.0
  %193 = vmatmul.mubr.f32.gmra.mrb[0].mxu0 %v73
  %v194 = vpop.f32.mrb[0].mxu0
  %v195 = vadd.f32 %v52, %v194
  %v196 = vpop.f32.mrb[0].mxu0
  %v197 = vadd.f32 %v56, %v196
  %198 = vmatprep.mubr.f32.mxu0 0.0
  %199 = vmatmul.mubr.f32.gmra.mrb[0].mxu0 %v76
  %v200 = vpop.f32.mrb[0].mxu0
  %v201 = vadd.f32 %v52, %v200
  %v202 = vpop.f32.mrb[0].mxu0
  %v203 = vadd.f32 %v56, %v202
  %204 = vmatprep.mubr.f32.mxu0 0.0
  %205 = vmatmul.mubr.f32.gmra.mrb[0].mxu0 %v79
  %v206 = vpop.f32.mrb[0].mxu0
  %v207 = vadd.f32 %v52, %v206
  %v208 = vpop.f32.mrb[0].mxu0
  %v209 = vadd.f32 %v56, %v208
  %210 = vmatprep.mubr.f32.mxu0 0.0
  %211 = vmatmul.mubr.f32.gmra.mrb[0].mxu0 %v82
  %v212 = vpop.f32.mrb[0].mxu0
  %v213 = vadd.f32 %v52, %v212
  %v214 = vpop.f32.mrb[0].mxu0
  %v215 = vadd.f32 %v56, %v214
  %216 = vmatprep.mubr.f32.mxu0 0.0
  %217 = vmatmul.mubr.f32.gmra.mrb[0].mxu0 %v85
  %v218 = vpop.f32.mrb[0].mxu0
  %v219 = vadd.f32 %v52, %v218
  %v220 = vpop.f32.mrb[0].mxu0
  %v221 = vadd.f32 %v56, %v220
  %222 = vmatprep.mubr.f32.mxu0 0.0
  %223 = vmatmul.mubr.f32.gmra.mrb[0].mxu0 %v88
  %v224 = vpop.f32.mrb[0].mxu0
  %v225 = vadd.f32 %v52, %v224
  %v226 = vpop.f32.mrb[0].mxu0
  %v227 = vadd.f32 %v56, %v226
  %228 = vmatprep.mubr.f32.mxu0 0.0
  %229 = vmatmul.mubr.f32.gmra.mrb[0].mxu0 %v91
  %v230 = vpop.f32.mrb[0].mxu0
  %v231 = vadd.f32 %v52, %v230
  %v232 = vpop.f32.mrb[0].mxu0
  %v233 = vadd.f32 %v56, %v232
  %234 = vmatprep.mubr.f32.mxu0 0.0
  %235 = vmatmul.mubr.f32.gmra.mrb[0].mxu0 %v94
  %v236 = vpop.f32.mrb[0].mxu0
  %v237 = vadd.f32 %v52, %v236
  %v238 = vpop.f32.mrb[0].mxu0
  %v239 = vadd.f32 %v56, %v238
  %240 = vmatprep.mubr.f32.mxu0 0.0
  %241 = vmatmul.mubr.f32.gmra.mrb[0].mxu0 %v97
  %v242 = vpop.f32.mrb[0].mxu0
  %v243 = vadd.f32 %v52, %v242
  %v244 = vpop.f32.mrb[0].mxu0
  %v245 = vadd.f32 %v56, %v244
  %246 = vmatprep.mubr.f32.mxu0 0.0
  %247 = vmatmul.mubr.f32.gmra.mrb[0].mxu0 %v100
  %v248 = vpop.f32.mrb[0].mxu0
  %v249 = vadd.f32 %v52, %v248
  %v250 = vpop.f32.mrb[0].mxu0
  %v251 = vadd.f32 %v56, %v250
  %252 = vmatprep.mubr.f32.mxu0 0.0
  %253 = vmatmul.mubr.f32.gmra.mrb[0].mxu0 %v103
  %v254 = vpop.f32.mrb[0].mxu0
  %v255 = vadd.f32 %v52, %v254
  %v256 = vpop.f32.mrb[0].mxu0
  %v257 = vadd.f32 %v56, %v256
  %258 = vmatprep.mubr.f32.mxu0 0.0
  %259 = vmatmul.mubr.f32.gmra.mrb[0].mxu0 %v106
  %v260 = vpop.f32.mrb[0].mxu0
  %v261 = vadd.f32 %v52, %v260
  %v262 = vpop.f32.mrb[0].mxu0
  %v263 = vadd.f32 %v56, %v262
  %264 = vmatprep.mubr.f32.mxu0 0.0
  %265 = vmatmul.mubr.f32.gmra.mrb[0].mxu0 %v109
  %v266 = vpop.f32.mrb[0].mxu0
  %v267 = vadd.f32 %v52, %v266
  %v268 = vpop.f32.mrb[0].mxu0
  %v269 = vadd.f32 %v56, %v268
  %270 = vmatprep.mubr.f32.mxu0 0.0
  %271 = vmatmul.mubr.f32.gmra.mrb[0].mxu0 %v112
  %v272 = vpop.f32.mrb[0].mxu0
  %v273 = vadd.f32 %v52, %v272
  %v274 = vpop.f32.mrb[0].mxu0
  %v275 = vadd.f32 %v56, %v274
  %276 = vmatprep.mubr.f32.mxu0 0.0
  %277 = vmatmul.mubr.f32.gmra.mrb[0].mxu0 %v115
  %v278 = vpop.f32.mrb[0].mxu0
  %v279 = vadd.f32 %v52, %v278
  %v280 = vpop.f32.mrb[0].mxu0
  %v281 = vadd.f32 %v56, %v280
  %282 = vdwg.mxu0
  %283 = vst [vmem:[#allocation2] sm:$0xff] %v189
  %vm284 = vcmask 523264
  %285 = vst.msk [vmem:[#allocation2 + $0x8] sm:$0xff] %vm284, %v191
  %286 = vst [vmem:[#allocation2 + $0x10] sm:$0xff] %v195
  %287 = vst.msk [vmem:[#allocation2 + $0x18] sm:$0xff] %vm284, %v197
  %288 = vst [vmem:[#allocation2 + $0x20] sm:$0xff] %v201
  %289 = vst.msk [vmem:[#allocation2 + $0x28] sm:$0xff] %vm284, %v203
  %290 = vst [vmem:[#allocation2 + $0x30] sm:$0xff] %v207
  %291 = vst.msk [vmem:[#allocation2 + $0x38] sm:$0xff] %vm284, %v209
  %292 = vst [vmem:[#allocation2 + $0x40] sm:$0xff] %v213
  %293 = vst.msk [vmem:[#allocation2 + $0x48] sm:$0xff] %vm284, %v215
  %294 = vst [vmem:[#allocation2 + $0x50] sm:$0xff] %v219
  %295 = vst.msk [vmem:[#allocation2 + $0x58] sm:$0xff] %vm284, %v221
  %296 = vst [vmem:[#allocation2 + $0x60] sm:$0xff] %v225
  %297 = vst.msk [vmem:[#allocation2 + $0x68] sm:$0xff] %vm284, %v227
  %298 = vst [vmem:[#allocation2 + $0x70] sm:$0xff] %v231
  %299 = vst.msk [vmem:[#allocation2 + $0x78] sm:$0xff] %vm284, %v233
  %300 = vst [vmem:[#allocation2 + $0x80] sm:$0xff] %v237
  %301 = vst.msk [vmem:[#allocation2 + $0x88] sm:$0xff] %vm284, %v239
  %302 = vst [vmem:[#allocation2 + $0x90] sm:$0xff] %v243
  %303 = vst.msk [vmem:[#allocation2 + $0x98] sm:$0xff] %vm284, %v245
  %304 = vst [vmem:[#allocation2 + $0xa0] sm:$0xff] %v249
  %305 = vst.msk [vmem:[#allocation2 + $0xa8] sm:$0xff] %vm284, %v251
  %306 = vst [vmem:[#allocation2 + $0xb0] sm:$0xff] %v255
  %307 = vst.msk [vmem:[#allocation2 + $0xb8] sm:$0xff] %vm284, %v257
  %308 = vst [vmem:[#allocation2 + $0xc0] sm:$0xff] %v261
  %309 = vst.msk [vmem:[#allocation2 + $0xc8] sm:$0xff] %vm284, %v263
  %310 = vst [vmem:[#allocation2 + $0xd0] sm:$0xff] %v267
  %311 = vst.msk [vmem:[#allocation2 + $0xd8] sm:$0xff] %vm284, %v269
  %312 = vst [vmem:[#allocation2 + $0xe0] sm:$0xff] %v273
  %313 = vst.msk [vmem:[#allocation2 + $0xe8] sm:$0xff] %vm284, %v275
  %314 = vst [vmem:[#allocation2 + $0xf0] sm:$0xff] %v279
  %315 = vst.msk [vmem:[#allocation2 + $0xf8] sm:$0xff] %vm284, %v281
  %v316 = vld [vmem:[%s3] sm:$0xf]
  %v317 = vld [vmem:[%s3 + $0x4] sm:$0xf]
  %v318 = vld [vmem:[%s3 + $0x8] sm:$0xf]
  %v319 = vld [vmem:[%s3 + $0xc] sm:$0xf]
  %v320 = vld [vmem:[%s3 + $0x10] sm:$0xf]
  %v321 = vld [vmem:[%s3 + $0x14] sm:$0xf]
  %v322 = vld [vmem:[%s3 + $0x18] sm:$0xf]
  %v323 = vld [vmem:[%s3 + $0x1c] sm:$0xf]
  %v324 = vld [vmem:[%s4] sm:$0xf]
  %v325 = vld [vmem:[%s4 + $0x4] sm:$0xf]
  %v326 = vld [vmem:[%s4 + $0x8] sm:$0xf]
  %v327 = vld [vmem:[%s4 + $0xc] sm:$0xf]
  %v328 = vld [vmem:[%s4 + $0x10] sm:$0xf]
  %v329 = vld [vmem:[%s4 + $0x14] sm:$0xf]
  %v330 = vld [vmem:[%s4 + $0x18] sm:$0xf]
  %v331 = vld [vmem:[%s4 + $0x1c] sm:$0xf]
  %v332 = vld [vmem:[%s5] sm:$0x1]
  %s333 = smul.u32 0, 2
  %s334 = smul.addr %s333, 8
  %s335 = scalar_lea.vmem [#allocation2], %s334
  %v336 = vld [vmem:[%s335] sm:$0xff]
  %v337 = vld [vmem:[%s335 + $0x8] sm:$0xff]
  %v338 = vld [vmem:[%s335 + $0x10] sm:$0xff]
  %v339 = vld [vmem:[%s335 + $0x18] sm:$0xff]
  %v348 = vunpack.c.l.b16 %v316
  %v349 = vunpack.c.l.b16 %v317
  %v350 = vunpack.c.l.b16 %v318
  %v351 = vunpack.c.l.b16 %v319
  %v352 = vunpack.c.l.b16 %v320
  %v353 = vunpack.c.l.b16 %v321
  %v354 = vunpack.c.l.b16 %v322
  %v355 = vunpack.c.l.b16 %v323
  %v356 = vpack.c.b16 %v349, %v348
  %v357 = vpack.c.b16 %v351, %v350
  %v358 = vpack.c.b16 %v353, %v352
  %v359 = vpack.c.b16 %v355, %v354
  %v365 = vsel %vm284, 0, 0
  %367 = vmatprep.subr.bf16.mxu0 0
  %368 = vmatpush1.bf16.msra.mxu0 %v356
  %369 = vmatprep.subr.bf16.mxu0 0
  %370 = vmatpush1.bf16.msra.mxu0 %v357
  %371 = vmatprep.subr.bf16.mxu0 0
  %372 = vmatpush1.bf16.msra.mxu0 %v358
  %373 = vmatprep.subr.bf16.mxu0 0
  %374 = vmatpush1.bf16.msra.mxu0 %v359
  %375 = vmatprep.subr.bf16.mxu0 0
  %376 = vmatpush1.bf16.msra.mxu0 0
  %377 = vmatprep.subr.bf16.mxu0 0
  %378 = vmatpush1.bf16.msra.mxu0 0
  %379 = vmatprep.subr.bf16.mxu0 0
  %380 = vmatpush1.bf16.msra.mxu0 0
  %381 = vmatprep.subr.bf16.mxu0 0
  %382 = vmatpush1.bf16.msra.mxu0 0
  %383 = vmatprep.subr.bf16.mxu0 0
  %384 = vmatpush1.bf16.msra.mxu0 0
  %385 = vmatprep.subr.bf16.mxu0 0
  %386 = vmatpush1.bf16.msra.mxu0 0
  %387 = vmatprep.subr.bf16.mxu0 0
  %388 = vmatpush1.bf16.msra.mxu0 0
  %389 = vmatprep.subr.bf16.mxu0 0
  %390 = vmatpush1.bf16.msra.mxu0 0
  %391 = vmatprep.subr.bf16.mxu0 0
  %392 = vmatpush1.bf16.msra.mxu0 0
  %393 = vmatprep.subr.bf16.mxu0 0
  %394 = vmatpush1.bf16.msra.mxu0 0
  %395 = vmatprep.subr.bf16.mxu0 0
  %396 = vmatpush1.bf16.msra.mxu0 0
  %397 = vmatprep.subr.bf16.mxu0 0
  %398 = vmatpush1.bf16.msra.mxu0 0
  %399 = vmatprep.mubr.bf16.mxu0 0
  %400 = vmatmul.mubr.bf16.gmra.mrb[0].mxu0 %v365
  %v401 = vpop.f32.mrb[0].mxu0
  %v402 = vadd.f32 0.0, %v401
  %v403 = vpop.f32.mrb[0].mxu0
  %v404 = vpop.f32.mrb[0].mxu0
  %v405 = vadd.f32 0.0, %v404
  %v406 = vpop.f32.mrb[0].mxu0
  %407 = vdwg.mxu0
  %v408 = vadd.f32 %v336, %v402
  %v409 = vadd.f32 %v338, %v405
  %v410 = vxor.u32 %v408, 2147483648
  %v411 = vxor.u32 %v409, 2147483648
  %v412 = vmul.f32 %v410, 1.442695
  %v413 = vpow.pop %v412
  %v414 = vmul.f32 %v411, 1.442695
  %v415 = vpow.pop %v414
  %v416 = vadd.f32 %v413, 1.0
  %v417 = vadd.f32 %v415, 1.0
  %v418 = vrcp.pop %v416
  %v419 = vmul.f32 1.0, %v418
  %v420 = vrcp.pop %v417
  %v421 = vmul.f32 1.0, %v420
  %v423 = vlaneseq
  %v424 = vshrl.u32 %v423, 7
  %v425 = vsub.s32 0, %v424
  %v426 = vrot.slane %v332, %v425
  %v436 = vunpack.c.l.b16 %v324
  %v437 = vunpack.c.l.b16 %v325
  %v438 = vunpack.c.l.b16 %v326
  %v439 = vunpack.c.l.b16 %v327
  %v440 = vunpack.c.l.b16 %v328
  %v441 = vunpack.c.l.b16 %v329
  %v442 = vunpack.c.l.b16 %v330
  %v443 = vunpack.c.l.b16 %v331
  %v444 = vpack.c.b16 %v437, %v436
  %v445 = vpack.c.b16 %v439, %v438
  %v446 = vpack.c.b16 %v441, %v440
  %v447 = vpack.c.b16 %v443, %v442
  %452 = vmatprep.subr.bf16.mxu0 0
  %453 = vmatpush1.bf16.msra.mxu0 %v444
  %454 = vmatprep.subr.bf16.mxu0 0
  %455 = vmatpush1.bf16.msra.mxu0 %v445
  %456 = vmatprep.subr.bf16.mxu0 0
  %457 = vmatpush1.bf16.msra.mxu0 %v446
  %458 = vmatprep.subr.bf16.mxu0 0
  %459 = vmatpush1.bf16.msra.mxu0 %v447
  %460 = vmatprep.subr.bf16.mxu0 0
  %461 = vmatpush1.bf16.msra.mxu0 0
  %462 = vmatprep.subr.bf16.mxu0 0
  %463 = vmatpush1.bf16.msra.mxu0 0
  %464 = vmatprep.subr.bf16.mxu0 0
  %465 = vmatpush1.bf16.msra.mxu0 0
  %466 = vmatprep.subr.bf16.mxu0 0
  %467 = vmatpush1.bf16.msra.mxu0 0
  %468 = vmatprep.subr.bf16.mxu0 0
  %469 = vmatpush1.bf16.msra.mxu0 0
  %470 = vmatprep.subr.bf16.mxu0 0
  %471 = vmatpush1.bf16.msra.mxu0 0
  %472 = vmatprep.subr.bf16.mxu0 0
  %473 = vmatpush1.bf16.msra.mxu0 0
  %474 = vmatprep.subr.bf16.mxu0 0
  %475 = vmatpush1.bf16.msra.mxu0 0
  %476 = vmatprep.subr.bf16.mxu0 0
  %477 = vmatpush1.bf16.msra.mxu0 0
  %478 = vmatprep.subr.bf16.mxu0 0
  %479 = vmatpush1.bf16.msra.mxu0 0
  %480 = vmatprep.subr.bf16.mxu0 0
  %481 = vmatpush1.bf16.msra.mxu0 0
  %482 = vmatprep.subr.bf16.mxu0 0
  %483 = vmatpush1.bf16.msra.mxu0 0
  %484 = vmatprep.mubr.bf16.mxu0 0
  %485 = vmatmul.mubr.bf16.gmra.mrb[0].mxu0 %v365
  %v486 = vpop.f32.mrb[0].mxu0
  %v487 = vadd.f32 %v426, %v486
  %v488 = vpop.f32.mrb[0].mxu0
  %v489 = vpop.f32.mrb[0].mxu0
  %v490 = vadd.f32 %v426, %v489
  %v491 = vpop.f32.mrb[0].mxu0
  %492 = vdwg.mxu0
  %v493 = vmul.f32 %v419, %v487
  %v494 = vmul.f32 %v421, %v490
  %v495 = vadd.f32 %v337, %v493
  %v496 = vadd.f32 %v339, %v494
  %v497 = vtanh.pop %v495
  %v498 = vtanh.pop %v496
  %v499 = vsub.f32 0.0, %v497
  %v500 = vsub.f32 0.0, %v498
  %503 = vrot.lane.b32.xlu0 %v499, 64
  %v504 = vpop.permute.xlu0 %503
  %505 = vrot.lane.b32.xlu0 %v500, 64
  %v506 = vpop.permute.xlu0 %505
  %v509 = vmul.f32 %v419, %v504
  %v510 = vmul.f32 %v421, %v506
  %513 = vrot.lane.b32.xlu0 %v509, 64
  %v514 = vpop.permute.xlu0 %513
  %515 = vrot.lane.b32.xlu0 %v510, 64
  %v516 = vpop.permute.xlu0 %515
  %v519 = vadd.f32 %v497, %v514
  %v520 = vadd.f32 %v498, %v516
  %s521 = smul.u32 2, 2
  %s522 = smul.addr %s521, 8
  %s523 = scalar_lea.vmem [#allocation2], %s522
  %v524 = vld [vmem:[%s523] sm:$0xff]
  %v525 = vld [vmem:[%s523 + $0x8] sm:$0xff]
  %v526 = vld [vmem:[%s523 + $0x10] sm:$0xff]
  %v527 = vld [vmem:[%s523 + $0x18] sm:$0xff]
  %v528 = vpack.c.bf16 %v520, %v519
  %v530 = vsel %vm284, %v528, 0
  %532 = vmatprep.subr.bf16.mxu0 0
  %533 = vmatpush1.bf16.msra.mxu0 %v356
  %534 = vmatprep.subr.bf16.mxu0 0
  %535 = vmatpush1.bf16.msra.mxu0 %v357
  %536 = vmatprep.subr.bf16.mxu0 0
  %537 = vmatpush1.bf16.msra.mxu0 %v358
  %538 = vmatprep.subr.bf16.mxu0 0
  %539 = vmatpush1.bf16.msra.mxu0 %v359
  %540 = vmatprep.subr.bf16.mxu0 0
  %541 = vmatpush1.bf16.msra.mxu0 0
  %542 = vmatprep.subr.bf16.mxu0 0
  %543 = vmatpush1.bf16.msra.mxu0 0
  %544 = vmatprep.subr.bf16.mxu0 0
  %545 = vmatpush1.bf16.msra.mxu0 0
  %546 = vmatprep.subr.bf16.mxu0 0
  %547 = vmatpush1.bf16.msra.mxu0 0
  %548 = vmatprep.subr.bf16.mxu0 0
  %549 = vmatpush1.bf16.msra.mxu0 0
  %550 = vmatprep.subr.bf16.mxu0 0
  %551 = vmatpush1.bf16.msra.mxu0 0
  %552 = vmatprep.subr.bf16.mxu0 0
  %553 = vmatpush1.bf16.msra.mxu0 0
  %554 = vmatprep.subr.bf16.mxu0 0
  %555 = vmatpush1.bf16.msra.mxu0 0
  %556 = vmatprep.subr.bf16.mxu0 0
  %557 = vmatpush1.bf16.msra.mxu0 0
  %558 = vmatprep.subr.bf16.mxu0 0
  %559 = vmatpush1.bf16.msra.mxu0 0
  %560 = vmatprep.subr.bf16.mxu0 0
  %561 = vmatpush1.bf16.msra.mxu0 0
  %562 = vmatprep.subr.bf16.mxu0 0
  %563 = vmatpush1.bf16.msra.mxu0 0
  %564 = vmatprep.mubr.bf16.mxu0 0
  %565 = vmatmul.mubr.bf16.gmra.mrb[0].mxu0 %v530
  %v566 = vpop.f32.mrb[0].mxu0
  %v567 = vadd.f32 0.0, %v566
  %v568 = vpop.f32.mrb[0].mxu0
  %v569 = vpop.f32.mrb[0].mxu0
  %v570 = vadd.f32 0.0, %v569
  %v571 = vpop.f32.mrb[0].mxu0
  %572 = vdwg.mxu0
  %v573 = vadd.f32 %v524, %v567
  %v574 = vadd.f32 %v526, %v570
  %v575 = vxor.u32 %v573, 2147483648
  %v576 = vxor.u32 %v574, 2147483648
  %v577 = vmul.f32 %v575, 1.442695
  %v578 = vpow.pop %v577
  %v579 = vmul.f32 %v576, 1.442695
  %v580 = vpow.pop %v579
  %v581 = vadd.f32 %v578, 1.0
  %v582 = vadd.f32 %v580, 1.0
  %v583 = vrcp.pop %v581
  %v584 = vmul.f32 1.0, %v583
  %v585 = vrcp.pop %v582
  %v586 = vmul.f32 1.0, %v585
  %587 = vmatprep.subr.bf16.mxu0 0
  %588 = vmatpush1.bf16.msra.mxu0 %v444
  %589 = vmatprep.subr.bf16.mxu0 0
  %590 = vmatpush1.bf16.msra.mxu0 %v445
  %591 = vmatprep.subr.bf16.mxu0 0
  %592 = vmatpush1.bf16.msra.mxu0 %v446
  %593 = vmatprep.subr.bf16.mxu0 0
  %594 = vmatpush1.bf16.msra.mxu0 %v447
  %595 = vmatprep.subr.bf16.mxu0 0
  %596 = vmatpush1.bf16.msra.mxu0 0
  %597 = vmatprep.subr.bf16.mxu0 0
  %598 = vmatpush1.bf16.msra.mxu0 0
  %599 = vmatprep.subr.bf16.mxu0 0
  %600 = vmatpush1.bf16.msra.mxu0 0
  %601 = vmatprep.subr.bf16.mxu0 0
  %602 = vmatpush1.bf16.msra.mxu0 0
  %603 = vmatprep.subr.bf16.mxu0 0
  %604 = vmatpush1.bf16.msra.mxu0 0
  %605 = vmatprep.subr.bf16.mxu0 0
  %606 = vmatpush1.bf16.msra.mxu0 0
  %607 = vmatprep.subr.bf16.mxu0 0
  %608 = vmatpush1.bf16.msra.mxu0 0
  %609 = vmatprep.subr.bf16.mxu0 0
  %610 = vmatpush1.bf16.msra.mxu0 0
  %611 = vmatprep.subr.bf16.mxu0 0
  %612 = vmatpush1.bf16.msra.mxu0 0
  %613 = vmatprep.subr.bf16.mxu0 0
  %614 = vmatpush1.bf16.msra.mxu0 0
  %615 = vmatprep.subr.bf16.mxu0 0
  %616 = vmatpush1.bf16.msra.mxu0 0
  %617 = vmatprep.subr.bf16.mxu0 0
  %618 = vmatpush1.bf16.msra.mxu0 0
  %619 = vmatprep.mubr.bf16.mxu0 0
  %620 = vmatmul.mubr.bf16.gmra.mrb[0].mxu0 %v530
  %v621 = vpop.f32.mrb[0].mxu0
  %v622 = vadd.f32 %v426, %v621
  %v623 = vpop.f32.mrb[0].mxu0
  %v624 = vpop.f32.mrb[0].mxu0
  %v625 = vadd.f32 %v426, %v624
  %v626 = vpop.f32.mrb[0].mxu0
  %627 = vdwg.mxu0
  %v628 = vmul.f32 %v584, %v622
  %v629 = vmul.f32 %v586, %v625
  %v630 = vadd.f32 %v525, %v628
  %v631 = vadd.f32 %v527, %v629
  %v632 = vtanh.pop %v630
  %v633 = vtanh.pop %v631
  %v634 = vsub.f32 %v519, %v632
  %v635 = vsub.f32 %v520, %v633
  %638 = vrot.lane.b32.xlu0 %v634, 64
  %v639 = vpop.permute.xlu0 %638
  %640 = vrot.lane.b32.xlu0 %v635, 64
  %v641 = vpop.permute.xlu0 %640
  %v644 = vmul.f32 %v584, %v639
  %v645 = vmul.f32 %v586, %v641
  %648 = vrot.lane.b32.xlu0 %v644, 64
  %v649 = vpop.permute.xlu0 %648
  %650 = vrot.lane.b32.xlu0 %v645, 64
  %v651 = vpop.permute.xlu0 %650
  %v654 = vadd.f32 %v632, %v649
  %v655 = vadd.f32 %v633, %v651
  %s656 = smul.u32 4, 2
  %s657 = smul.addr %s656, 8
  %s658 = scalar_lea.vmem [#allocation2], %s657
  %v659 = vld [vmem:[%s658] sm:$0xff]
  %v660 = vld [vmem:[%s658 + $0x8] sm:$0xff]
  %v661 = vld [vmem:[%s658 + $0x10] sm:$0xff]
  %v662 = vld [vmem:[%s658 + $0x18] sm:$0xff]
  %v663 = vpack.c.bf16 %v655, %v654
  %v665 = vsel %vm284, %v663, 0
  %667 = vmatprep.subr.bf16.mxu0 0
  %668 = vmatpush1.bf16.msra.mxu0 %v356
  %669 = vmatprep.subr.bf16.mxu0 0
  %670 = vmatpush1.bf16.msra.mxu0 %v357
  %671 = vmatprep.subr.bf16.mxu0 0
  %672 = vmatpush1.bf16.msra.mxu0 %v358
  %673 = vmatprep.subr.bf16.mxu0 0
  %674 = vmatpush1.bf16.msra.mxu0 %v359
  %675 = vmatprep.subr.bf16.mxu0 0
  %676 = vmatpush1.bf16.msra.mxu0 0
  %677 = vmatprep.subr.bf16.mxu0 0
  %678 = vmatpush1.bf16.msra.mxu0 0
  %679 = vmatprep.subr.bf16.mxu0 0
  %680 = vmatpush1.bf16.msra.mxu0 0
  %681 = vmatprep.subr.bf16.mxu0 0
  %682 = vmatpush1.bf16.msra.mxu0 0
  %683 = vmatprep.subr.bf16.mxu0 0
  %684 = vmatpush1.bf16.msra.mxu0 0
  %685 = vmatprep.subr.bf16.mxu0 0
  %686 = vmatpush1.bf16.msra.mxu0 0
  %687 = vmatprep.subr.bf16.mxu0 0
  %688 = vmatpush1.bf16.msra.mxu0 0
  %689 = vmatprep.subr.bf16.mxu0 0
  %690 = vmatpush1.bf16.msra.mxu0 0
  %691 = vmatprep.subr.bf16.mxu0 0
  %692 = vmatpush1.bf16.msra.mxu0 0
  %693 = vmatprep.subr.bf16.mxu0 0
  %694 = vmatpush1.bf16.msra.mxu0 0
  %695 = vmatprep.subr.bf16.mxu0 0
  %696 = vmatpush1.bf16.msra.mxu0 0
  %697 = vmatprep.subr.bf16.mxu0 0
  %698 = vmatpush1.bf16.msra.mxu0 0
  %699 = vmatprep.mubr.bf16.mxu0 0
  %700 = vmatmul.mubr.bf16.gmra.mrb[0].mxu0 %v665
  %v701 = vpop.f32.mrb[0].mxu0
  %v702 = vadd.f32 0.0, %v701
  %v703 = vpop.f32.mrb[0].mxu0
  %v704 = vpop.f32.mrb[0].mxu0
  %v705 = vadd.f32 0.0, %v704
  %v706 = vpop.f32.mrb[0].mxu0
  %707 = vdwg.mxu0
  %v708 = vadd.f32 %v659, %v702
  %v709 = vadd.f32 %v661, %v705
  %v710 = vxor.u32 %v708, 2147483648
  %v711 = vxor.u32 %v709, 2147483648
  %v712 = vmul.f32 %v710, 1.442695
  %v713 = vpow.pop %v712
  %v714 = vmul.f32 %v711, 1.442695
  %v715 = vpow.pop %v714
  %v716 = vadd.f32 %v713, 1.0
  %v717 = vadd.f32 %v715, 1.0
  %v718 = vrcp.pop %v716
  %v719 = vmul.f32 1.0, %v718
  %v720 = vrcp.pop %v717
  %v721 = vmul.f32 1.0, %v720
  %722 = vmatprep.subr.bf16.mxu0 0
  %723 = vmatpush1.bf16.msra.mxu0 %v444
  %724 = vmatprep.subr.bf16.mxu0 0
  %725 = vmatpush1.bf16.msra.mxu0 %v445
  %726 = vmatprep.subr.bf16.mxu0 0
  %727 = vmatpush1.bf16.msra.mxu0 %v446
  %728 = vmatprep.subr.bf16.mxu0 0
  %729 = vmatpush1.bf16.msra.mxu0 %v447
  %730 = vmatprep.subr.bf16.mxu0 0
  %731 = vmatpush1.bf16.msra.mxu0 0
  %732 = vmatprep.subr.bf16.mxu0 0
  %733 = vmatpush1.bf16.msra.mxu0 0
  %734 = vmatprep.subr.bf16.mxu0 0
  %735 = vmatpush1.bf16.msra.mxu0 0
  %736 = vmatprep.subr.bf16.mxu0 0
  %737 = vmatpush1.bf16.msra.mxu0 0
  %738 = vmatprep.subr.bf16.mxu0 0
  %739 = vmatpush1.bf16.msra.mxu0 0
  %740 = vmatprep.subr.bf16.mxu0 0
  %741 = vmatpush1.bf16.msra.mxu0 0
  %742 = vmatprep.subr.bf16.mxu0 0
  %743 = vmatpush1.bf16.msra.mxu0 0
  %744 = vmatprep.subr.bf16.mxu0 0
  %745 = vmatpush1.bf16.msra.mxu0 0
  %746 = vmatprep.subr.bf16.mxu0 0
  %747 = vmatpush1.bf16.msra.mxu0 0
  %748 = vmatprep.subr.bf16.mxu0 0
  %749 = vmatpush1.bf16.msra.mxu0 0
  %750 = vmatprep.subr.bf16.mxu0 0
  %751 = vmatpush1.bf16.msra.mxu0 0
  %752 = vmatprep.subr.bf16.mxu0 0
  %753 = vmatpush1.bf16.msra.mxu0 0
  %754 = vmatprep.mubr.bf16.mxu0 0
  %755 = vmatmul.mubr.bf16.gmra.mrb[0].mxu0 %v665
  %v756 = vpop.f32.mrb[0].mxu0
  %v757 = vadd.f32 %v426, %v756
  %v758 = vpop.f32.mrb[0].mxu0
  %v759 = vpop.f32.mrb[0].mxu0
  %v760 = vadd.f32 %v426, %v759
  %v761 = vpop.f32.mrb[0].mxu0
  %762 = vdwg.mxu0
  %v763 = vmul.f32 %v719, %v757
  %v764 = vmul.f32 %v721, %v760
  %v765 = vadd.f32 %v660, %v763
  %v766 = vadd.f32 %v662, %v764
  %v767 = vtanh.pop %v765
  %v768 = vtanh.pop %v766
  %v769 = vsub.f32 %v654, %v767
  %v770 = vsub.f32 %v655, %v768
  %773 = vrot.lane.b32.xlu0 %v769, 64
  %v774 = vpop.permute.xlu0 %773
  %775 = vrot.lane.b32.xlu0 %v770, 64
  %v776 = vpop.permute.xlu0 %775
  %v779 = vmul.f32 %v719, %v774
  %v780 = vmul.f32 %v721, %v776
  %783 = vrot.lane.b32.xlu0 %v779, 64
  %v784 = vpop.permute.xlu0 %783
  %785 = vrot.lane.b32.xlu0 %v780, 64
  %v786 = vpop.permute.xlu0 %785
  %v789 = vadd.f32 %v767, %v784
  %v790 = vadd.f32 %v768, %v786
  %s791 = smul.u32 6, 2
  %s792 = smul.addr %s791, 8
  %s793 = scalar_lea.vmem [#allocation2], %s792
  %v794 = vld [vmem:[%s793] sm:$0xff]
  %v795 = vld [vmem:[%s793 + $0x8] sm:$0xff]
  %v796 = vld [vmem:[%s793 + $0x10] sm:$0xff]
  %v797 = vld [vmem:[%s793 + $0x18] sm:$0xff]
  %v798 = vpack.c.bf16 %v790, %v789
  %v800 = vsel %vm284, %v798, 0
  %802 = vmatprep.subr.bf16.mxu0 0
  %803 = vmatpush1.bf16.msra.mxu0 %v356
  %804 = vmatprep.subr.bf16.mxu0 0
  %805 = vmatpush1.bf16.msra.mxu0 %v357
  %806 = vmatprep.subr.bf16.mxu0 0
  %807 = vmatpush1.bf16.msra.mxu0 %v358
  %808 = vmatprep.subr.bf16.mxu0 0
  %809 = vmatpush1.bf16.msra.mxu0 %v359
  %810 = vmatprep.subr.bf16.mxu0 0
  %811 = vmatpush1.bf16.msra.mxu0 0
  %812 = vmatprep.subr.bf16.mxu0 0
  %813 = vmatpush1.bf16.msra.mxu0 0
  %814 = vmatprep.subr.bf16.mxu0 0
  %815 = vmatpush1.bf16.msra.mxu0 0
  %816 = vmatprep.subr.bf16.mxu0 0
  %817 = vmatpush1.bf16.msra.mxu0 0
  %818 = vmatprep.subr.bf16.mxu0 0
  %819 = vmatpush1.bf16.msra.mxu0 0
  %820 = vmatprep.subr.bf16.mxu0 0
  %821 = vmatpush1.bf16.msra.mxu0 0
  %822 = vmatprep.subr.bf16.mxu0 0
  %823 = vmatpush1.bf16.msra.mxu0 0
  %824 = vmatprep.subr.bf16.mxu0 0
  %825 = vmatpush1.bf16.msra.mxu0 0
  %826 = vmatprep.subr.bf16.mxu0 0
  %827 = vmatpush1.bf16.msra.mxu0 0
  %828 = vmatprep.subr.bf16.mxu0 0
  %829 = vmatpush1.bf16.msra.mxu0 0
  %830 = vmatprep.subr.bf16.mxu0 0
  %831 = vmatpush1.bf16.msra.mxu0 0
  %832 = vmatprep.subr.bf16.mxu0 0
  %833 = vmatpush1.bf16.msra.mxu0 0
  %834 = vmatprep.mubr.bf16.mxu0 0
  %835 = vmatmul.mubr.bf16.gmra.mrb[0].mxu0 %v800
  %v836 = vpop.f32.mrb[0].mxu0
  %v837 = vadd.f32 0.0, %v836
  %v838 = vpop.f32.mrb[0].mxu0
  %v839 = vpop.f32.mrb[0].mxu0
  %v840 = vadd.f32 0.0, %v839
  %v841 = vpop.f32.mrb[0].mxu0
  %842 = vdwg.mxu0
  %v843 = vadd.f32 %v794, %v837
  %v844 = vadd.f32 %v796, %v840
  %v845 = vxor.u32 %v843, 2147483648
  %v846 = vxor.u32 %v844, 2147483648
  %v847 = vmul.f32 %v845, 1.442695
  %v848 = vpow.pop %v847
  %v849 = vmul.f32 %v846, 1.442695
  %v850 = vpow.pop %v849
  %v851 = vadd.f32 %v848, 1.0
  %v852 = vadd.f32 %v850, 1.0
  %v853 = vrcp.pop %v851
  %v854 = vmul.f32 1.0, %v853
  %v855 = vrcp.pop %v852
  %v856 = vmul.f32 1.0, %v855
  %857 = vmatprep.subr.bf16.mxu0 0
  %858 = vmatpush1.bf16.msra.mxu0 %v444
  %859 = vmatprep.subr.bf16.mxu0 0
  %860 = vmatpush1.bf16.msra.mxu0 %v445
  %861 = vmatprep.subr.bf16.mxu0 0
  %862 = vmatpush1.bf16.msra.mxu0 %v446
  %863 = vmatprep.subr.bf16.mxu0 0
  %864 = vmatpush1.bf16.msra.mxu0 %v447
  %865 = vmatprep.subr.bf16.mxu0 0
  %866 = vmatpush1.bf16.msra.mxu0 0
  %867 = vmatprep.subr.bf16.mxu0 0
  %868 = vmatpush1.bf16.msra.mxu0 0
  %869 = vmatprep.subr.bf16.mxu0 0
  %870 = vmatpush1.bf16.msra.mxu0 0
  %871 = vmatprep.subr.bf16.mxu0 0
  %872 = vmatpush1.bf16.msra.mxu0 0
  %873 = vmatprep.subr.bf16.mxu0 0
  %874 = vmatpush1.bf16.msra.mxu0 0
  %875 = vmatprep.subr.bf16.mxu0 0
  %876 = vmatpush1.bf16.msra.mxu0 0
  %877 = vmatprep.subr.bf16.mxu0 0
  %878 = vmatpush1.bf16.msra.mxu0 0
  %879 = vmatprep.subr.bf16.mxu0 0
  %880 = vmatpush1.bf16.msra.mxu0 0
  %881 = vmatprep.subr.bf16.mxu0 0
  %882 = vmatpush1.bf16.msra.mxu0 0
  %883 = vmatprep.subr.bf16.mxu0 0
  %884 = vmatpush1.bf16.msra.mxu0 0
  %885 = vmatprep.subr.bf16.mxu0 0
  %886 = vmatpush1.bf16.msra.mxu0 0
  %887 = vmatprep.subr.bf16.mxu0 0
  %888 = vmatpush1.bf16.msra.mxu0 0
  %889 = vmatprep.mubr.bf16.mxu0 0
  %890 = vmatmul.mubr.bf16.gmra.mrb[0].mxu0 %v800
  %v891 = vpop.f32.mrb[0].mxu0
  %v892 = vadd.f32 %v426, %v891
  %v893 = vpop.f32.mrb[0].mxu0
  %v894 = vpop.f32.mrb[0].mxu0
  %v895 = vadd.f32 %v426, %v894
  %v896 = vpop.f32.mrb[0].mxu0
  %897 = vdwg.mxu0
  %v898 = vmul.f32 %v854, %v892
  %v899 = vmul.f32 %v856, %v895
  %v900 = vadd.f32 %v795, %v898
  %v901 = vadd.f32 %v797, %v899
  %v902 = vtanh.pop %v900
  %v903 = vtanh.pop %v901
  %v904 = vsub.f32 %v789, %v902
  %v905 = vsub.f32 %v790, %v903
  %908 = vrot.lane.b32.xlu0 %v904, 64
  %v909 = vpop.permute.xlu0 %908
  %910 = vrot.lane.b32.xlu0 %v905, 64
  %v911 = vpop.permute.xlu0 %910
  %v914 = vmul.f32 %v854, %v909
  %v915 = vmul.f32 %v856, %v911
  %918 = vrot.lane.b32.xlu0 %v914, 64
  %v919 = vpop.permute.xlu0 %918
  %920 = vrot.lane.b32.xlu0 %v915, 64
  %v921 = vpop.permute.xlu0 %920
  %v924 = vadd.f32 %v902, %v919
  %v925 = vadd.f32 %v903, %v921
  %s926 = smul.u32 8, 2
  %s927 = smul.addr %s926, 8
  %s928 = scalar_lea.vmem [#allocation2], %s927
  %v929 = vld [vmem:[%s928] sm:$0xff]
  %v930 = vld [vmem:[%s928 + $0x8] sm:$0xff]
  %v931 = vld [vmem:[%s928 + $0x10] sm:$0xff]
  %v932 = vld [vmem:[%s928 + $0x18] sm:$0xff]
  %v933 = vpack.c.bf16 %v925, %v924
  %v935 = vsel %vm284, %v933, 0
  %937 = vmatprep.subr.bf16.mxu0 0
  %938 = vmatpush1.bf16.msra.mxu0 %v356
  %939 = vmatprep.subr.bf16.mxu0 0
  %940 = vmatpush1.bf16.msra.mxu0 %v357
  %941 = vmatprep.subr.bf16.mxu0 0
  %942 = vmatpush1.bf16.msra.mxu0 %v358
  %943 = vmatprep.subr.bf16.mxu0 0
  %944 = vmatpush1.bf16.msra.mxu0 %v359
  %945 = vmatprep.subr.bf16.mxu0 0
  %946 = vmatpush1.bf16.msra.mxu0 0
  %947 = vmatprep.subr.bf16.mxu0 0
  %948 = vmatpush1.bf16.msra.mxu0 0
  %949 = vmatprep.subr.bf16.mxu0 0
  %950 = vmatpush1.bf16.msra.mxu0 0
  %951 = vmatprep.subr.bf16.mxu0 0
  %952 = vmatpush1.bf16.msra.mxu0 0
  %953 = vmatprep.subr.bf16.mxu0 0
  %954 = vmatpush1.bf16.msra.mxu0 0
  %955 = vmatprep.subr.bf16.mxu0 0
  %956 = vmatpush1.bf16.msra.mxu0 0
  %957 = vmatprep.subr.bf16.mxu0 0
  %958 = vmatpush1.bf16.msra.mxu0 0
  %959 = vmatprep.subr.bf16.mxu0 0
  %960 = vmatpush1.bf16.msra.mxu0 0
  %961 = vmatprep.subr.bf16.mxu0 0
  %962 = vmatpush1.bf16.msra.mxu0 0
  %963 = vmatprep.subr.bf16.mxu0 0
  %964 = vmatpush1.bf16.msra.mxu0 0
  %965 = vmatprep.subr.bf16.mxu0 0
  %966 = vmatpush1.bf16.msra.mxu0 0
  %967 = vmatprep.subr.bf16.mxu0 0
  %968 = vmatpush1.bf16.msra.mxu0 0
  %969 = vmatprep.mubr.bf16.mxu0 0
  %970 = vmatmul.mubr.bf16.gmra.mrb[0].mxu0 %v935
  %v971 = vpop.f32.mrb[0].mxu0
  %v972 = vadd.f32 0.0, %v971
  %v973 = vpop.f32.mrb[0].mxu0
  %v974 = vpop.f32.mrb[0].mxu0
  %v975 = vadd.f32 0.0, %v974
  %v976 = vpop.f32.mrb[0].mxu0
  %977 = vdwg.mxu0
  %v978 = vadd.f32 %v929, %v972
  %v979 = vadd.f32 %v931, %v975
  %v980 = vxor.u32 %v978, 2147483648
  %v981 = vxor.u32 %v979, 2147483648
  %v982 = vmul.f32 %v980, 1.442695
  %v983 = vpow.pop %v982
  %v984 = vmul.f32 %v981, 1.442695
  %v985 = vpow.pop %v984
  %v986 = vadd.f32 %v983, 1.0
  %v987 = vadd.f32 %v985, 1.0
  %v988 = vrcp.pop %v986
  %v989 = vmul.f32 1.0, %v988
  %v990 = vrcp.pop %v987
  %v991 = vmul.f32 1.0, %v990
  %992 = vmatprep.subr.bf16.mxu0 0
  %993 = vmatpush1.bf16.msra.mxu0 %v444
  %994 = vmatprep.subr.bf16.mxu0 0
  %995 = vmatpush1.bf16.msra.mxu0 %v445
  %996 = vmatprep.subr.bf16.mxu0 0
  %997 = vmatpush1.bf16.msra.mxu0 %v446
  %998 = vmatprep.subr.bf16.mxu0 0
  %999 = vmatpush1.bf16.msra.mxu0 %v447
  %1000 = vmatprep.subr.bf16.mxu0 0
  %1001 = vmatpush1.bf16.msra.mxu0 0
  %1002 = vmatprep.subr.bf16.mxu0 0
  %1003 = vmatpush1.bf16.msra.mxu0 0
  %1004 = vmatprep.subr.bf16.mxu0 0
  %1005 = vmatpush1.bf16.msra.mxu0 0
  %1006 = vmatprep.subr.bf16.mxu0 0
  %1007 = vmatpush1.bf16.msra.mxu0 0
  %1008 = vmatprep.subr.bf16.mxu0 0
  %1009 = vmatpush1.bf16.msra.mxu0 0
  %1010 = vmatprep.subr.bf16.mxu0 0
  %1011 = vmatpush1.bf16.msra.mxu0 0
  %1012 = vmatprep.subr.bf16.mxu0 0
  %1013 = vmatpush1.bf16.msra.mxu0 0
  %1014 = vmatprep.subr.bf16.mxu0 0
  %1015 = vmatpush1.bf16.msra.mxu0 0
  %1016 = vmatprep.subr.bf16.mxu0 0
  %1017 = vmatpush1.bf16.msra.mxu0 0
  %1018 = vmatprep.subr.bf16.mxu0 0
  %1019 = vmatpush1.bf16.msra.mxu0 0
  %1020 = vmatprep.subr.bf16.mxu0 0
  %1021 = vmatpush1.bf16.msra.mxu0 0
  %1022 = vmatprep.subr.bf16.mxu0 0
  %1023 = vmatpush1.bf16.msra.mxu0 0
  %1024 = vmatprep.mubr.bf16.mxu0 0
  %1025 = vmatmul.mubr.bf16.gmra.mrb[0].mxu0 %v935
  %v1026 = vpop.f32.mrb[0].mxu0
  %v1027 = vadd.f32 %v426, %v1026
  %v1028 = vpop.f32.mrb[0].mxu0
  %v1029 = vpop.f32.mrb[0].mxu0
  %v1030 = vadd.f32 %v426, %v1029
  %v1031 = vpop.f32.mrb[0].mxu0
  %1032 = vdwg.mxu0
  %v1033 = vmul.f32 %v989, %v1027
  %v1034 = vmul.f32 %v991, %v1030
  %v1035 = vadd.f32 %v930, %v1033
  %v1036 = vadd.f32 %v932, %v1034
  %v1037 = vtanh.pop %v1035
  %v1038 = vtanh.pop %v1036
  %v1039 = vsub.f32 %v924, %v1037
  %v1040 = vsub.f32 %v925, %v1038
  %1043 = vrot.lane.b32.xlu0 %v1039, 64
  %v1044 = vpop.permute.xlu0 %1043
  %1045 = vrot.lane.b32.xlu0 %v1040, 64
  %v1046 = vpop.permute.xlu0 %1045
  %v1049 = vmul.f32 %v989, %v1044
  %v1050 = vmul.f32 %v991, %v1046
  %1053 = vrot.lane.b32.xlu0 %v1049, 64
  %v1054 = vpop.permute.xlu0 %1053
  %1055 = vrot.lane.b32.xlu0 %v1050, 64
  %v1056 = vpop.permute.xlu0 %1055
  %v1059 = vadd.f32 %v1037, %v1054
  %v1060 = vadd.f32 %v1038, %v1056
  %s1061 = smul.u32 10, 2
  %s1062 = smul.addr %s1061, 8
  %s1063 = scalar_lea.vmem [#allocation2], %s1062
  %v1064 = vld [vmem:[%s1063] sm:$0xff]
  %v1065 = vld [vmem:[%s1063 + $0x8] sm:$0xff]
  %v1066 = vld [vmem:[%s1063 + $0x10] sm:$0xff]
  %v1067 = vld [vmem:[%s1063 + $0x18] sm:$0xff]
  %v1068 = vpack.c.bf16 %v1060, %v1059
  %v1070 = vsel %vm284, %v1068, 0
  %1072 = vmatprep.subr.bf16.mxu0 0
  %1073 = vmatpush1.bf16.msra.mxu0 %v356
  %1074 = vmatprep.subr.bf16.mxu0 0
  %1075 = vmatpush1.bf16.msra.mxu0 %v357
  %1076 = vmatprep.subr.bf16.mxu0 0
  %1077 = vmatpush1.bf16.msra.mxu0 %v358
  %1078 = vmatprep.subr.bf16.mxu0 0
  %1079 = vmatpush1.bf16.msra.mxu0 %v359
  %1080 = vmatprep.subr.bf16.mxu0 0
  %1081 = vmatpush1.bf16.msra.mxu0 0
  %1082 = vmatprep.subr.bf16.mxu0 0
  %1083 = vmatpush1.bf16.msra.mxu0 0
  %1084 = vmatprep.subr.bf16.mxu0 0
  %1085 = vmatpush1.bf16.msra.mxu0 0
  %1086 = vmatprep.subr.bf16.mxu0 0
  %1087 = vmatpush1.bf16.msra.mxu0 0
  %1088 = vmatprep.subr.bf16.mxu0 0
  %1089 = vmatpush1.bf16.msra.mxu0 0
  %1090 = vmatprep.subr.bf16.mxu0 0
  %1091 = vmatpush1.bf16.msra.mxu0 0
  %1092 = vmatprep.subr.bf16.mxu0 0
  %1093 = vmatpush1.bf16.msra.mxu0 0
  %1094 = vmatprep.subr.bf16.mxu0 0
  %1095 = vmatpush1.bf16.msra.mxu0 0
  %1096 = vmatprep.subr.bf16.mxu0 0
  %1097 = vmatpush1.bf16.msra.mxu0 0
  %1098 = vmatprep.subr.bf16.mxu0 0
  %1099 = vmatpush1.bf16.msra.mxu0 0
  %1100 = vmatprep.subr.bf16.mxu0 0
  %1101 = vmatpush1.bf16.msra.mxu0 0
  %1102 = vmatprep.subr.bf16.mxu0 0
  %1103 = vmatpush1.bf16.msra.mxu0 0
  %1104 = vmatprep.mubr.bf16.mxu0 0
  %1105 = vmatmul.mubr.bf16.gmra.mrb[0].mxu0 %v1070
  %v1106 = vpop.f32.mrb[0].mxu0
  %v1107 = vadd.f32 0.0, %v1106
  %v1108 = vpop.f32.mrb[0].mxu0
  %v1109 = vpop.f32.mrb[0].mxu0
  %v1110 = vadd.f32 0.0, %v1109
  %v1111 = vpop.f32.mrb[0].mxu0
  %1112 = vdwg.mxu0
  %v1113 = vadd.f32 %v1064, %v1107
  %v1114 = vadd.f32 %v1066, %v1110
  %v1115 = vxor.u32 %v1113, 2147483648
  %v1116 = vxor.u32 %v1114, 2147483648
  %v1117 = vmul.f32 %v1115, 1.442695
  %v1118 = vpow.pop %v1117
  %v1119 = vmul.f32 %v1116, 1.442695
  %v1120 = vpow.pop %v1119
  %v1121 = vadd.f32 %v1118, 1.0
  %v1122 = vadd.f32 %v1120, 1.0
  %v1123 = vrcp.pop %v1121
  %v1124 = vmul.f32 1.0, %v1123
  %v1125 = vrcp.pop %v1122
  %v1126 = vmul.f32 1.0, %v1125
  %1127 = vmatprep.subr.bf16.mxu0 0
  %1128 = vmatpush1.bf16.msra.mxu0 %v444
  %1129 = vmatprep.subr.bf16.mxu0 0
  %1130 = vmatpush1.bf16.msra.mxu0 %v445
  %1131 = vmatprep.subr.bf16.mxu0 0
  %1132 = vmatpush1.bf16.msra.mxu0 %v446
  %1133 = vmatprep.subr.bf16.mxu0 0
  %1134 = vmatpush1.bf16.msra.mxu0 %v447
  %1135 = vmatprep.subr.bf16.mxu0 0
  %1136 = vmatpush1.bf16.msra.mxu0 0
  %1137 = vmatprep.subr.bf16.mxu0 0
  %1138 = vmatpush1.bf16.msra.mxu0 0
  %1139 = vmatprep.subr.bf16.mxu0 0
  %1140 = vmatpush1.bf16.msra.mxu0 0
  %1141 = vmatprep.subr.bf16.mxu0 0
  %1142 = vmatpush1.bf16.msra.mxu0 0
  %1143 = vmatprep.subr.bf16.mxu0 0
  %1144 = vmatpush1.bf16.msra.mxu0 0
  %1145 = vmatprep.subr.bf16.mxu0 0
  %1146 = vmatpush1.bf16.msra.mxu0 0
  %1147 = vmatprep.subr.bf16.mxu0 0
  %1148 = vmatpush1.bf16.msra.mxu0 0
  %1149 = vmatprep.subr.bf16.mxu0 0
  %1150 = vmatpush1.bf16.msra.mxu0 0
  %1151 = vmatprep.subr.bf16.mxu0 0
  %1152 = vmatpush1.bf16.msra.mxu0 0
  %1153 = vmatprep.subr.bf16.mxu0 0
  %1154 = vmatpush1.bf16.msra.mxu0 0
  %1155 = vmatprep.subr.bf16.mxu0 0
  %1156 = vmatpush1.bf16.msra.mxu0 0
  %1157 = vmatprep.subr.bf16.mxu0 0
  %1158 = vmatpush1.bf16.msra.mxu0 0
  %1159 = vmatprep.mubr.bf16.mxu0 0
  %1160 = vmatmul.mubr.bf16.gmra.mrb[0].mxu0 %v1070
  %v1161 = vpop.f32.mrb[0].mxu0
  %v1162 = vadd.f32 %v426, %v1161
  %v1163 = vpop.f32.mrb[0].mxu0
  %v1164 = vpop.f32.mrb[0].mxu0
  %v1165 = vadd.f32 %v426, %v1164
  %v1166 = vpop.f32.mrb[0].mxu0
  %1167 = vdwg.mxu0
  %v1168 = vmul.f32 %v1124, %v1162
  %v1169 = vmul.f32 %v1126, %v1165
  %v1170 = vadd.f32 %v1065, %v1168
  %v1171 = vadd.f32 %v1067, %v1169
  %v1172 = vtanh.pop %v1170
  %v1173 = vtanh.pop %v1171
  %v1174 = vsub.f32 %v1059, %v1172
  %v1175 = vsub.f32 %v1060, %v1173
  %1178 = vrot.lane.b32.xlu0 %v1174, 64
  %v1179 = vpop.permute.xlu0 %1178
  %1180 = vrot.lane.b32.xlu0 %v1175, 64
  %v1181 = vpop.permute.xlu0 %1180
  %v1184 = vmul.f32 %v1124, %v1179
  %v1185 = vmul.f32 %v1126, %v1181
  %1188 = vrot.lane.b32.xlu0 %v1184, 64
  %v1189 = vpop.permute.xlu0 %1188
  %1190 = vrot.lane.b32.xlu0 %v1185, 64
  %v1191 = vpop.permute.xlu0 %1190
  %v1194 = vadd.f32 %v1172, %v1189
  %v1195 = vadd.f32 %v1173, %v1191
  %s1196 = smul.u32 12, 2
  %s1197 = smul.addr %s1196, 8
  %s1198 = scalar_lea.vmem [#allocation2], %s1197
  %v1199 = vld [vmem:[%s1198] sm:$0xff]
  %v1200 = vld [vmem:[%s1198 + $0x8] sm:$0xff]
  %v1201 = vld [vmem:[%s1198 + $0x10] sm:$0xff]
  %v1202 = vld [vmem:[%s1198 + $0x18] sm:$0xff]
  %v1203 = vpack.c.bf16 %v1195, %v1194
  %v1205 = vsel %vm284, %v1203, 0
  %1207 = vmatprep.subr.bf16.mxu0 0
  %1208 = vmatpush1.bf16.msra.mxu0 %v356
  %1209 = vmatprep.subr.bf16.mxu0 0
  %1210 = vmatpush1.bf16.msra.mxu0 %v357
  %1211 = vmatprep.subr.bf16.mxu0 0
  %1212 = vmatpush1.bf16.msra.mxu0 %v358
  %1213 = vmatprep.subr.bf16.mxu0 0
  %1214 = vmatpush1.bf16.msra.mxu0 %v359
  %1215 = vmatprep.subr.bf16.mxu0 0
  %1216 = vmatpush1.bf16.msra.mxu0 0
  %1217 = vmatprep.subr.bf16.mxu0 0
  %1218 = vmatpush1.bf16.msra.mxu0 0
  %1219 = vmatprep.subr.bf16.mxu0 0
  %1220 = vmatpush1.bf16.msra.mxu0 0
  %1221 = vmatprep.subr.bf16.mxu0 0
  %1222 = vmatpush1.bf16.msra.mxu0 0
  %1223 = vmatprep.subr.bf16.mxu0 0
  %1224 = vmatpush1.bf16.msra.mxu0 0
  %1225 = vmatprep.subr.bf16.mxu0 0
  %1226 = vmatpush1.bf16.msra.mxu0 0
  %1227 = vmatprep.subr.bf16.mxu0 0
  %1228 = vmatpush1.bf16.msra.mxu0 0
  %1229 = vmatprep.subr.bf16.mxu0 0
  %1230 = vmatpush1.bf16.msra.mxu0 0
  %1231 = vmatprep.subr.bf16.mxu0 0
  %1232 = vmatpush1.bf16.msra.mxu0 0
  %1233 = vmatprep.subr.bf16.mxu0 0
  %1234 = vmatpush1.bf16.msra.mxu0 0
  %1235 = vmatprep.subr.bf16.mxu0 0
  %1236 = vmatpush1.bf16.msra.mxu0 0
  %1237 = vmatprep.subr.bf16.mxu0 0
  %1238 = vmatpush1.bf16.msra.mxu0 0
  %1239 = vmatprep.mubr.bf16.mxu0 0
  %1240 = vmatmul.mubr.bf16.gmra.mrb[0].mxu0 %v1205
  %v1241 = vpop.f32.mrb[0].mxu0
  %v1242 = vadd.f32 0.0, %v1241
  %v1243 = vpop.f32.mrb[0].mxu0
  %v1244 = vpop.f32.mrb[0].mxu0
  %v1245 = vadd.f32 0.0, %v1244
  %v1246 = vpop.f32.mrb[0].mxu0
  %1247 = vdwg.mxu0
  %v1248 = vadd.f32 %v1199, %v1242
  %v1249 = vadd.f32 %v1201, %v1245
  %v1250 = vxor.u32 %v1248, 2147483648
  %v1251 = vxor.u32 %v1249, 2147483648
  %v1252 = vmul.f32 %v1250, 1.442695
  %v1253 = vpow.pop %v1252
  %v1254 = vmul.f32 %v1251, 1.442695
  %v1255 = vpow.pop %v1254
  %v1256 = vadd.f32 %v1253, 1.0
  %v1257 = vadd.f32 %v1255, 1.0
  %v1258 = vrcp.pop %v1256
  %v1259 = vmul.f32 1.0, %v1258
  %v1260 = vrcp.pop %v1257
  %v1261 = vmul.f32 1.0, %v1260
  %1262 = vmatprep.subr.bf16.mxu0 0
  %1263 = vmatpush1.bf16.msra.mxu0 %v444
  %1264 = vmatprep.subr.bf16.mxu0 0
  %1265 = vmatpush1.bf16.msra.mxu0 %v445
  %1266 = vmatprep.subr.bf16.mxu0 0
  %1267 = vmatpush1.bf16.msra.mxu0 %v446
  %1268 = vmatprep.subr.bf16.mxu0 0
  %1269 = vmatpush1.bf16.msra.mxu0 %v447
  %1270 = vmatprep.subr.bf16.mxu0 0
  %1271 = vmatpush1.bf16.msra.mxu0 0
  %1272 = vmatprep.subr.bf16.mxu0 0
  %1273 = vmatpush1.bf16.msra.mxu0 0
  %1274 = vmatprep.subr.bf16.mxu0 0
  %1275 = vmatpush1.bf16.msra.mxu0 0
  %1276 = vmatprep.subr.bf16.mxu0 0
  %1277 = vmatpush1.bf16.msra.mxu0 0
  %1278 = vmatprep.subr.bf16.mxu0 0
  %1279 = vmatpush1.bf16.msra.mxu0 0
  %1280 = vmatprep.subr.bf16.mxu0 0
  %1281 = vmatpush1.bf16.msra.mxu0 0
  %1282 = vmatprep.subr.bf16.mxu0 0
  %1283 = vmatpush1.bf16.msra.mxu0 0
  %1284 = vmatprep.subr.bf16.mxu0 0
  %1285 = vmatpush1.bf16.msra.mxu0 0
  %1286 = vmatprep.subr.bf16.mxu0 0
  %1287 = vmatpush1.bf16.msra.mxu0 0
  %1288 = vmatprep.subr.bf16.mxu0 0
  %1289 = vmatpush1.bf16.msra.mxu0 0
  %1290 = vmatprep.subr.bf16.mxu0 0
  %1291 = vmatpush1.bf16.msra.mxu0 0
  %1292 = vmatprep.subr.bf16.mxu0 0
  %1293 = vmatpush1.bf16.msra.mxu0 0
  %1294 = vmatprep.mubr.bf16.mxu0 0
  %1295 = vmatmul.mubr.bf16.gmra.mrb[0].mxu0 %v1205
  %v1296 = vpop.f32.mrb[0].mxu0
  %v1297 = vadd.f32 %v426, %v1296
  %v1298 = vpop.f32.mrb[0].mxu0
  %v1299 = vpop.f32.mrb[0].mxu0
  %v1300 = vadd.f32 %v426, %v1299
  %v1301 = vpop.f32.mrb[0].mxu0
  %1302 = vdwg.mxu0
  %v1303 = vmul.f32 %v1259, %v1297
  %v1304 = vmul.f32 %v1261, %v1300
  %v1305 = vadd.f32 %v1200, %v1303
  %v1306 = vadd.f32 %v1202, %v1304
  %v1307 = vtanh.pop %v1305
  %v1308 = vtanh.pop %v1306
  %v1309 = vsub.f32 %v1194, %v1307
  %v1310 = vsub.f32 %v1195, %v1308
  %1313 = vrot.lane.b32.xlu0 %v1309, 64
  %v1314 = vpop.permute.xlu0 %1313
  %1315 = vrot.lane.b32.xlu0 %v1310, 64
  %v1316 = vpop.permute.xlu0 %1315
  %v1319 = vmul.f32 %v1259, %v1314
  %v1320 = vmul.f32 %v1261, %v1316
  %1323 = vrot.lane.b32.xlu0 %v1319, 64
  %v1324 = vpop.permute.xlu0 %1323
  %1325 = vrot.lane.b32.xlu0 %v1320, 64
  %v1326 = vpop.permute.xlu0 %1325
  %v1329 = vadd.f32 %v1307, %v1324
  %v1330 = vadd.f32 %v1308, %v1326
  %s1331 = smul.u32 14, 2
  %s1332 = smul.addr %s1331, 8
  %s1333 = scalar_lea.vmem [#allocation2], %s1332
  %v1334 = vld [vmem:[%s1333] sm:$0xff]
  %v1335 = vld [vmem:[%s1333 + $0x8] sm:$0xff]
  %v1336 = vld [vmem:[%s1333 + $0x10] sm:$0xff]
  %v1337 = vld [vmem:[%s1333 + $0x18] sm:$0xff]
  %v1338 = vpack.c.bf16 %v1330, %v1329
  %v1340 = vsel %vm284, %v1338, 0
  %1342 = vmatprep.subr.bf16.mxu0 0
  %1343 = vmatpush1.bf16.msra.mxu0 %v356
  %1344 = vmatprep.subr.bf16.mxu0 0
  %1345 = vmatpush1.bf16.msra.mxu0 %v357
  %1346 = vmatprep.subr.bf16.mxu0 0
  %1347 = vmatpush1.bf16.msra.mxu0 %v358
  %1348 = vmatprep.subr.bf16.mxu0 0
  %1349 = vmatpush1.bf16.msra.mxu0 %v359
  %1350 = vmatprep.subr.bf16.mxu0 0
  %1351 = vmatpush1.bf16.msra.mxu0 0
  %1352 = vmatprep.subr.bf16.mxu0 0
  %1353 = vmatpush1.bf16.msra.mxu0 0
  %1354 = vmatprep.subr.bf16.mxu0 0
  %1355 = vmatpush1.bf16.msra.mxu0 0
  %1356 = vmatprep.subr.bf16.mxu0 0
  %1357 = vmatpush1.bf16.msra.mxu0 0
  %1358 = vmatprep.subr.bf16.mxu0 0
  %1359 = vmatpush1.bf16.msra.mxu0 0
  %1360 = vmatprep.subr.bf16.mxu0 0
  %1361 = vmatpush1.bf16.msra.mxu0 0
  %1362 = vmatprep.subr.bf16.mxu0 0
  %1363 = vmatpush1.bf16.msra.mxu0 0
  %1364 = vmatprep.subr.bf16.mxu0 0
  %1365 = vmatpush1.bf16.msra.mxu0 0
  %1366 = vmatprep.subr.bf16.mxu0 0
  %1367 = vmatpush1.bf16.msra.mxu0 0
  %1368 = vmatprep.subr.bf16.mxu0 0
  %1369 = vmatpush1.bf16.msra.mxu0 0
  %1370 = vmatprep.subr.bf16.mxu0 0
  %1371 = vmatpush1.bf16.msra.mxu0 0
  %1372 = vmatprep.subr.bf16.mxu0 0
  %1373 = vmatpush1.bf16.msra.mxu0 0
  %1374 = vmatprep.mubr.bf16.mxu0 0
  %1375 = vmatmul.mubr.bf16.gmra.mrb[0].mxu0 %v1340
  %v1376 = vpop.f32.mrb[0].mxu0
  %v1377 = vadd.f32 0.0, %v1376
  %v1378 = vpop.f32.mrb[0].mxu0
  %v1379 = vpop.f32.mrb[0].mxu0
  %v1380 = vadd.f32 0.0, %v1379
  %v1381 = vpop.f32.mrb[0].mxu0
  %1382 = vdwg.mxu0
  %v1383 = vadd.f32 %v1334, %v1377
  %v1384 = vadd.f32 %v1336, %v1380
  %v1385 = vxor.u32 %v1383, 2147483648
  %v1386 = vxor.u32 %v1384, 2147483648
  %v1387 = vmul.f32 %v1385, 1.442695
  %v1388 = vpow.pop %v1387
  %v1389 = vmul.f32 %v1386, 1.442695
  %v1390 = vpow.pop %v1389
  %v1391 = vadd.f32 %v1388, 1.0
  %v1392 = vadd.f32 %v1390, 1.0
  %v1393 = vrcp.pop %v1391
  %v1394 = vmul.f32 1.0, %v1393
  %v1395 = vrcp.pop %v1392
  %v1396 = vmul.f32 1.0, %v1395
  %1397 = vmatprep.subr.bf16.mxu0 0
  %1398 = vmatpush1.bf16.msra.mxu0 %v444
  %1399 = vmatprep.subr.bf16.mxu0 0
  %1400 = vmatpush1.bf16.msra.mxu0 %v445
  %1401 = vmatprep.subr.bf16.mxu0 0
  %1402 = vmatpush1.bf16.msra.mxu0 %v446
  %1403 = vmatprep.subr.bf16.mxu0 0
  %1404 = vmatpush1.bf16.msra.mxu0 %v447
  %1405 = vmatprep.subr.bf16.mxu0 0
  %1406 = vmatpush1.bf16.msra.mxu0 0
  %1407 = vmatprep.subr.bf16.mxu0 0
  %1408 = vmatpush1.bf16.msra.mxu0 0
  %1409 = vmatprep.subr.bf16.mxu0 0
  %1410 = vmatpush1.bf16.msra.mxu0 0
  %1411 = vmatprep.subr.bf16.mxu0 0
  %1412 = vmatpush1.bf16.msra.mxu0 0
  %1413 = vmatprep.subr.bf16.mxu0 0
  %1414 = vmatpush1.bf16.msra.mxu0 0
  %1415 = vmatprep.subr.bf16.mxu0 0
  %1416 = vmatpush1.bf16.msra.mxu0 0
  %1417 = vmatprep.subr.bf16.mxu0 0
  %1418 = vmatpush1.bf16.msra.mxu0 0
  %1419 = vmatprep.subr.bf16.mxu0 0
  %1420 = vmatpush1.bf16.msra.mxu0 0
  %1421 = vmatprep.subr.bf16.mxu0 0
  %1422 = vmatpush1.bf16.msra.mxu0 0
  %1423 = vmatprep.subr.bf16.mxu0 0
  %1424 = vmatpush1.bf16.msra.mxu0 0
  %1425 = vmatprep.subr.bf16.mxu0 0
  %1426 = vmatpush1.bf16.msra.mxu0 0
  %1427 = vmatprep.subr.bf16.mxu0 0
  %1428 = vmatpush1.bf16.msra.mxu0 0
  %1429 = vmatprep.mubr.bf16.mxu0 0
  %1430 = vmatmul.mubr.bf16.gmra.mrb[0].mxu0 %v1340
  %v1431 = vpop.f32.mrb[0].mxu0
  %v1432 = vadd.f32 %v426, %v1431
  %v1433 = vpop.f32.mrb[0].mxu0
  %v1434 = vpop.f32.mrb[0].mxu0
  %v1435 = vadd.f32 %v426, %v1434
  %v1436 = vpop.f32.mrb[0].mxu0
  %1437 = vdwg.mxu0
  %v1438 = vmul.f32 %v1394, %v1432
  %v1439 = vmul.f32 %v1396, %v1435
  %v1440 = vadd.f32 %v1335, %v1438
  %v1441 = vadd.f32 %v1337, %v1439
  %v1442 = vtanh.pop %v1440
  %v1443 = vtanh.pop %v1441
  %v1444 = vsub.f32 %v1329, %v1442
  %v1445 = vsub.f32 %v1330, %v1443
  %1448 = vrot.lane.b32.xlu0 %v1444, 64
  %v1449 = vpop.permute.xlu0 %1448
  %1450 = vrot.lane.b32.xlu0 %v1445, 64
  %v1451 = vpop.permute.xlu0 %1450
  %v1454 = vmul.f32 %v1394, %v1449
  %v1455 = vmul.f32 %v1396, %v1451
  %1458 = vrot.lane.b32.xlu0 %v1454, 64
  %v1459 = vpop.permute.xlu0 %1458
  %1460 = vrot.lane.b32.xlu0 %v1455, 64
  %v1461 = vpop.permute.xlu0 %1460
  %v1464 = vadd.f32 %v1442, %v1459
  %v1465 = vadd.f32 %v1443, %v1461
  %v1466 = vld [vmem:[%s6] sm:$0xff]
  %v1467 = vld [vmem:[%s6 + $0x8] sm:$0xff]
  %v1468 = vld [vmem:[%s6 + $0x10] sm:$0xff]
  %v1469 = vld [vmem:[%s6 + $0x18] sm:$0xff]
  %v1470 = vld [vmem:[%s6 + $0x20] sm:$0xff]
  %v1471 = vld [vmem:[%s6 + $0x28] sm:$0xff]
  %v1472 = vld [vmem:[%s6 + $0x30] sm:$0xff]
  %v1473 = vld [vmem:[%s6 + $0x38] sm:$0xff]
  %v1474 = vld [vmem:[%s7] sm:$0x1]
  %v1476 = vlaneseq
  %v1477 = vshrl.u32 %v1476, 7
  %v1478 = vsub.s32 0, %v1477
  %v1479 = vrot.slane %v1474, %v1478
  %v1482 = vsel %vm284, %v1464, 0
  %v1485 = vsel %vm284, %v1465, 0
  %1487 = vmatprep.subr.mxu0 0.0
  %1488 = vmatpush1.msra.mxu0 %v1466
  %1489 = vmatprep.subr.mxu0 0.0
  %1490 = vmatpush1.msra.mxu0 %v1467
  %1491 = vmatprep.subr.mxu0 0.0
  %1492 = vmatpush1.msra.mxu0 %v1468
  %1493 = vmatprep.subr.mxu0 0.0
  %1494 = vmatpush1.msra.mxu0 %v1469
  %1495 = vmatprep.subr.mxu0 0.0
  %1496 = vmatpush1.msra.mxu0 %v1470
  %1497 = vmatprep.subr.mxu0 0.0
  %1498 = vmatpush1.msra.mxu0 %v1471
  %1499 = vmatprep.subr.mxu0 0.0
  %1500 = vmatpush1.msra.mxu0 %v1472
  %1501 = vmatprep.subr.mxu0 0.0
  %1502 = vmatpush1.msra.mxu0 %v1473
  %1503 = vmatprep.subr.mxu0 0.0
  %1504 = vmatpush1.msra.mxu0 0.0
  %1505 = vmatprep.subr.mxu0 0.0
  %1506 = vmatpush1.msra.mxu0 0.0
  %1507 = vmatprep.subr.mxu0 0.0
  %1508 = vmatpush1.msra.mxu0 0.0
  %1509 = vmatprep.subr.mxu0 0.0
  %1510 = vmatpush1.msra.mxu0 0.0
  %1511 = vmatprep.subr.mxu0 0.0
  %1512 = vmatpush1.msra.mxu0 0.0
  %1513 = vmatprep.subr.mxu0 0.0
  %1514 = vmatpush1.msra.mxu0 0.0
  %1515 = vmatprep.subr.mxu0 0.0
  %1516 = vmatpush1.msra.mxu0 0.0
  %1517 = vmatprep.subr.mxu0 0.0
  %1518 = vmatpush1.msra.mxu0 0.0
  %1519 = vmatprep.subr.mxu0 0.0
  %1520 = vmatpush1.msra.mxu0 0.0
  %1521 = vmatprep.subr.mxu0 0.0
  %1522 = vmatpush1.msra.mxu0 0.0
  %1523 = vmatprep.subr.mxu0 0.0
  %1524 = vmatpush1.msra.mxu0 0.0
  %1525 = vmatprep.subr.mxu0 0.0
  %1526 = vmatpush1.msra.mxu0 0.0
  %1527 = vmatprep.subr.mxu0 0.0
  %1528 = vmatpush1.msra.mxu0 0.0
  %1529 = vmatprep.subr.mxu0 0.0
  %1530 = vmatpush1.msra.mxu0 0.0
  %1531 = vmatprep.subr.mxu0 0.0
  %1532 = vmatpush1.msra.mxu0 0.0
  %1533 = vmatprep.subr.mxu0 0.0
  %1534 = vmatpush1.msra.mxu0 0.0
  %1535 = vmatprep.subr.mxu0 0.0
  %1536 = vmatpush1.msra.mxu0 0.0
  %1537 = vmatprep.subr.mxu0 0.0
  %1538 = vmatpush1.msra.mxu0 0.0
  %1539 = vmatprep.subr.mxu0 0.0
  %1540 = vmatpush1.msra.mxu0 0.0
  %1541 = vmatprep.subr.mxu0 0.0
  %1542 = vmatpush1.msra.mxu0 0.0
  %1543 = vmatprep.subr.mxu0 0.0
  %1544 = vmatpush1.msra.mxu0 0.0
  %1545 = vmatprep.subr.mxu0 0.0
  %1546 = vmatpush1.msra.mxu0 0.0
  %1547 = vmatprep.subr.mxu0 0.0
  %1548 = vmatpush1.msra.mxu0 0.0
  %1549 = vmatprep.subr.mxu0 0.0
  %1550 = vmatpush1.msra.mxu0 0.0
  %1551 = vmatprep.mubr.f32.mxu0 0.0
  %1552 = vmatmul.mubr.f32.gmra.mrb[0].mxu0 %v1482
  %v1553 = vpop.f32.mrb[0].mxu0
  %v1554 = vadd.f32 %v1479, %v1553
  %v1555 = vpop.f32.mrb[0].mxu0
  %1556 = vmatprep.mubr.f32.mxu0 0.0
  %1557 = vmatmul.mubr.f32.gmra.mrb[0].mxu0 %v1485
  %v1558 = vpop.f32.mrb[0].mxu0
  %v1559 = vadd.f32 %v1479, %v1558
  %v1560 = vpop.f32.mrb[0].mxu0
  %1561 = vdwg.mxu0
  %v1562 = vtanh.pop %v1554
  %v1563 = vtanh.pop %v1559
  %1564 = vst.msk [vmem:[%s8] sm:$0xff] %vm68, %v1562
  %1565 = vst.msk [vmem:[%s8 + $0x8] sm:$0xff] %vm68, %v1563
  // Predicated region
  $region34: #{gru_model_forward.1} parent=0 // pred_check
    _
  $region35: #{gru_model_forward.1} parent=0 // pred_check_branch
    %1567 = sbr.rel (0) target = $region37
  $region36: #{gru_model_forward.1} parent=0 // pred_region
    _
  $region37: #{gru_model_forward.1} parent=0 // pred_fallthru
    _
  // Predicated region
  $region38: #{gru_model_forward.1} parent=0 // pred_check
    _
  $region39: #{gru_model_forward.1} parent=0 // pred_check_branch
    %1569 = sbr.rel (0) target = $region41
  $region40: #{gru_model_forward.1} parent=0 // pred_region
    _
  $region41: #{gru_model_forward.1} parent=0 // pred_fallthru
    _

</llo_original>
